<compile_context>
chip_gen: v7x
topology: tpu7x:2x2x1
jax: 0.10.0
libtpu: 0.0.40
codegen_flags: <defaults>
</compile_context>

<pallas_src>
import jax
import jax.numpy as jnp
from jax import lax
from jax.experimental import pallas as pl
from jax.experimental.pallas import tpu as pltpu


def _scse8_kernel(u_ref, wg_ref, bg_ref, wconv_ref, bconv_ref, out_ref, pad_ref):
    # u_ref:    (1, H*W, C)        one batch element, pixels x channels
    # wg_ref:   (C, 2)             [w_sse | w_cse] merged gate weights
    # bg_ref:   (1, 2)             [0, b_cse]
    # wconv_ref:(9*2C, C)          im2col 3x3 conv weight (tap-major)
    # bconv_ref:(1, C)
    # pad_ref:  (H+2, W+2, 2C)     VMEM scratch (zero border + gated concat)
    _, HW, C = u_ref.shape
    Hp2, Wp2, C2 = pad_ref.shape
    H, W = Hp2 - 2, Wp2 - 2

    u2 = u_ref[0]                                                  # (H*W, C)

    # ---- merged sSE / cSE gates: one matmul, one sigmoid -----------------
    g = jax.nn.sigmoid(
        jnp.dot(u2, wg_ref[...], preferred_element_type=jnp.float32)
        + bg_ref[...])                                             # (H*W, 2)

    # gated activations, concatenated along channel: [U_sse | U_cse]
    cat = jnp.concatenate([u2 * g[:, 0:1], u2 * g[:, 1:2]], axis=-1)  # (H*W, 2C)

    # ---- padded buffer: zero ONLY the 1-px border, overwrite interior ----
    pad_ref[0:1, :, :] = jnp.zeros((1, Wp2, C2), jnp.float32)
    pad_ref[H + 1:H + 2, :, :] = jnp.zeros((1, Wp2, C2), jnp.float32)
    pad_ref[:, 0:1, :] = jnp.zeros((Hp2, 1, C2), jnp.float32)
    pad_ref[:, W + 1:W + 2, :] = jnp.zeros((Hp2, 1, C2), jnp.float32)
    pad_ref[1:H + 1, 1:W + 1, :] = cat.reshape(H, W, C2)

    # ---- 3x3 conv (padding=1) as ONE im2col matmul on the MXU ------------
    windows = [pad_ref[ky:ky + H, kx:kx + W, :].reshape(HW, C2)
               for ky in range(3) for kx in range(3)]
    slab = jnp.concatenate(windows, axis=-1)                       # (H*W, 9*2C)
    conv = jnp.dot(slab, wconv_ref[...],
                   preferred_element_type=jnp.float32)             # (H*W, C)

    # ---- bias + residual --------------------------------------------------
    out_ref[0] = (conv + bconv_ref[...] + u2).astype(out_ref.dtype)


def scse_8(u, w_sse, w_cse, b_cse, w_conv, b_conv):
    """u: (N, H, W, C) float32. Returns (N, H, W, C)."""
    N, H, W, C = u.shape
    HW = H * W

    # wrapper-side layout plumbing / weight packing (all free outside the kernel)
    u2 = u.reshape(N, HW, C)
    w_gates = jnp.stack([w_sse, w_cse], axis=1).astype(jnp.float32)          # (C, 2)
    b_gates = jnp.stack([jnp.zeros((), jnp.float32),
                         jnp.asarray(b_cse, jnp.float32)]).reshape(1, 2)     # (1, 2)
    wconv_im2col = w_conv.reshape(9 * 2 * C, C).astype(jnp.float32)          # (72, C)
    bconv2 = b_conv.reshape(1, C).astype(jnp.float32)

    out2 = pl.pallas_call(
        _scse8_kernel,
        out_shape=jax.ShapeDtypeStruct((N, HW, C), u.dtype),
        grid_spec=pltpu.PrefetchScalarGridSpec(
            num_scalar_prefetch=0,
            grid=(N,),
            in_specs=[
                pl.BlockSpec((1, HW, C), lambda n: (n, 0, 0)),
                pl.BlockSpec((C, 2), lambda n: (0, 0)),
                pl.BlockSpec((1, 2), lambda n: (0, 0)),
                pl.BlockSpec((9 * 2 * C, C), lambda n: (0, 0)),
                pl.BlockSpec((1, C), lambda n: (0, 0)),
            ],
            out_specs=pl.BlockSpec((1, HW, C), lambda n: (n, 0, 0)),
            scratch_shapes=[pltpu.VMEM((H + 2, W + 2, 2 * C), jnp.float32)],
        ),
        compiler_params=pltpu.CompilerParams(
            # batch elements are independent -> shard across v7x's 2 TCs
            dimension_semantics=("parallel",)),
    )(u2, w_gates, b_gates, wconv_im2col, bconv2)

    return out2.reshape(N, H, W, C)


def scse_8_ref(u, w_sse, w_cse, b_cse, w_conv, b_conv):
    """Plain-JAX reference (NHWC activations, HWIO conv weight)."""
    q_sse = jax.nn.sigmoid(jnp.einsum('nhwc,c->nhw', u, w_sse))[..., None]
    q_cse = jax.nn.sigmoid(jnp.einsum('nhwc,c->nhw', u, w_cse) + b_cse)[..., None]
    cat = jnp.concatenate([u * q_sse, u * q_cse], axis=-1)
    conv = lax.conv_general_dilated(
        cat, w_conv, window_strides=(1, 1), padding='SAME',
        dimension_numbers=('NHWC', 'HWIO', 'NHWC'))
    return conv + b_conv + u


if __name__ == "__main__":
    key = jax.random.PRNGKey(0)
    N, C, H, W = 2, 4, 16, 16                 # PyTorch input would be (2, 4, 16, 16) NCHW
    ks = jax.random.split(key, 6)

    u = jax.random.normal(ks[0], (N, H, W, C), jnp.float32)
    # deterministic synthetic parameters (shapes from the module __init__)
    w_sse = 0.5 * jax.random.normal(ks[1], (C,), jnp.float32)               # sSE.Conv1x1 (no bias)
    w_cse = 0.5 * jax.random.normal(ks[2], (C,), jnp.float32)               # cSE Deepwise conv weight
    b_cse = jnp.float32(0.1)                                                # cSE Deepwise conv bias
    w_conv = 0.1 * jax.random.normal(ks[3], (3, 3, 2 * C, C), jnp.float32)  # 3x3 fuse conv (HWIO)
    b_conv = 0.1 * jax.random.normal(ks[4], (C,), jnp.float32)

    out = scse_8(u, w_sse, w_cse, b_cse, w_conv, b_conv)
    out = jax.block_until_ready(out)

    ref = scse_8_ref(u, w_sse, w_cse, b_cse, w_conv, b_conv)
    max_err = float(jnp.max(jnp.abs(out - ref)))
    assert jnp.allclose(out, ref, atol=1e-4, rtol=1e-4), f"max_err={max_err}"
    print("KERNEL_OK")
</pallas_src>

<mosaic_0001>
module attributes {stable_mosaic.version = 11 : i64} {
  func.func @_scse8_kernel(%arg0: i32, %arg1: memref<1x256x4xf32, #tpu.memory_space<vmem>>, %arg2: memref<4x2xf32, #tpu.memory_space<vmem>>, %arg3: memref<1x2xf32, #tpu.memory_space<vmem>>, %arg4: memref<72x4xf32, #tpu.memory_space<vmem>>, %arg5: memref<1x4xf32, #tpu.memory_space<vmem>>, %arg6: memref<1x256x4xf32, #tpu.memory_space<vmem>>, %arg7: memref<18x18x8xf32, #tpu.memory_space<vmem>>) attributes {dimension_semantics = [#tpu.dimension_semantics<parallel>], iteration_bounds = array<i64: 2>, scalar_prefetch = 0 : i64, scratch_operands = 1 : i64, tpu.core_type = #tpu.core_type<tc>, window_params = [{transform_indices = @transform_0, window_bounds = array<i64: 1, 256, 4>}, {pipeline_mode = #tpu.pipeline_mode<synchronous>, transform_indices = @transform_1, window_bounds = array<i64: 4, 2>}, {pipeline_mode = #tpu.pipeline_mode<synchronous>, transform_indices = @transform_2, window_bounds = array<i64: 1, 2>}, {pipeline_mode = #tpu.pipeline_mode<synchronous>, transform_indices = @transform_3, window_bounds = array<i64: 72, 4>}, {pipeline_mode = #tpu.pipeline_mode<synchronous>, transform_indices = @transform_4, window_bounds = array<i64: 1, 4>}, {transform_indices = @transform_5, window_bounds = array<i64: 1, 256, 4>}]} {
    %c0 = arith.constant 0 : index
    %c0_0 = arith.constant 0 : index
    %c0_1 = arith.constant 0 : index
    %0 = vector.load %arg1[%c0, %c0_0, %c0_1] : memref<1x256x4xf32, #tpu.memory_space<vmem>>, vector<1x256x4xf32>
    %1 = vector.shape_cast %0 : vector<1x256x4xf32> to vector<256x4xf32>
    %c0_2 = arith.constant 0 : index
    %c0_3 = arith.constant 0 : index
    %2 = vector.load %arg2[%c0_2, %c0_3] : memref<4x2xf32, #tpu.memory_space<vmem>>, vector<4x2xf32>
    %cst = arith.constant dense<0.000000e+00> : vector<256x2xf32>
    %3 = tpu.matmul %1, %2, %cst {dimension_numbers = #tpu.dot_dimension_numbers<[1], [0], [0], [1], [0, 0, 1, 1], [], []>} : vector<256x4xf32>, vector<4x2xf32>, vector<256x2xf32> -> vector<256x2xf32>
    %c0_4 = arith.constant 0 : index
    %c0_5 = arith.constant 0 : index
    %4 = vector.load %arg3[%c0_4, %c0_5] : memref<1x2xf32, #tpu.memory_space<vmem>>, vector<1x2xf32>
    %5 = vector.broadcast %4 : vector<1x2xf32> to vector<256x2xf32>
    %6 = arith.addf %3, %5 : vector<256x2xf32>
    %7 = arith.negf %6 : vector<256x2xf32>
    %8 = math.exp %7 : vector<256x2xf32>
    %cst_6 = arith.constant 1.000000e+00 : f32
    %9 = vector.broadcast %cst_6 : f32 to vector<256x2xf32>
    %10 = arith.addf %9, %8 : vector<256x2xf32>
    %11 = arith.divf %9, %10 : vector<256x2xf32>
    %12 = vector.extract_strided_slice %11 {offsets = [0, 0], sizes = [256, 1], strides = [1, 1]} : vector<256x2xf32> to vector<256x1xf32>
    %13 = vector.broadcast %12 : vector<256x1xf32> to vector<256x4xf32>
    %14 = arith.mulf %1, %13 : vector<256x4xf32>
    %15 = vector.extract_strided_slice %11 {offsets = [0, 1], sizes = [256, 1], strides = [1, 1]} : vector<256x2xf32> to vector<256x1xf32>
    %16 = vector.broadcast %15 : vector<256x1xf32> to vector<256x4xf32>
    %17 = arith.mulf %1, %16 : vector<256x4xf32>
    %18 = tpu.concatenate %14, %17 in 1 : vector<256x4xf32>, vector<256x4xf32> -> vector<256x8xf32>
    %cst_7 = arith.constant 0.000000e+00 : f32
    %19 = vector.broadcast %cst_7 : f32 to vector<1x18x8xf32>
    %c0_8 = arith.constant 0 : index
    %c0_9 = arith.constant 0 : index
    %c0_10 = arith.constant 0 : index
    %20 = vector.load %arg7[%c0_8, %c0_9, %c0_10] : memref<18x18x8xf32, #tpu.memory_space<vmem>>, vector<1x18x8xf32>
    tpu.vector_store %arg7[%c0_8, %c0_9, %c0_10], %19 {strides = array<i32>} : memref<18x18x8xf32, #tpu.memory_space<vmem>>, vector<1x18x8xf32>,
    %cst_11 = arith.constant 0.000000e+00 : f32
    %21 = vector.broadcast %cst_11 : f32 to vector<1x18x8xf32>
    %c17 = arith.constant 17 : index
    %c0_12 = arith.constant 0 : index
    %c0_13 = arith.constant 0 : index
    %22 = vector.load %arg7[%c17, %c0_12, %c0_13] : memref<18x18x8xf32, #tpu.memory_space<vmem>>, vector<1x18x8xf32>
    tpu.vector_store %arg7[%c17, %c0_12, %c0_13], %21 {strides = array<i32>} : memref<18x18x8xf32, #tpu.memory_space<vmem>>, vector<1x18x8xf32>,
    %cst_14 = arith.constant 0.000000e+00 : f32
    %23 = vector.broadcast %cst_14 : f32 to vector<18x1x8xf32>
    %c0_15 = arith.constant 0 : index
    %c0_16 = arith.constant 0 : index
    %c0_17 = arith.constant 0 : index
    %24 = vector.load %arg7[%c0_15, %c0_16, %c0_17] : memref<18x18x8xf32, #tpu.memory_space<vmem>>, vector<18x1x8xf32>
    tpu.vector_store %arg7[%c0_15, %c0_16, %c0_17], %23 {strides = array<i32>} : memref<18x18x8xf32, #tpu.memory_space<vmem>>, vector<18x1x8xf32>,
    %cst_18 = arith.constant 0.000000e+00 : f32
    %25 = vector.broadcast %cst_18 : f32 to vector<18x1x8xf32>
    %c0_19 = arith.constant 0 : index
    %c17_20 = arith.constant 17 : index
    %c0_21 = arith.constant 0 : index
    %26 = vector.load %arg7[%c0_19, %c17_20, %c0_21] : memref<18x18x8xf32, #tpu.memory_space<vmem>>, vector<18x1x8xf32>
    tpu.vector_store %arg7[%c0_19, %c17_20, %c0_21], %25 {strides = array<i32>} : memref<18x18x8xf32, #tpu.memory_space<vmem>>, vector<18x1x8xf32>,
    %27 = vector.shape_cast %18 : vector<256x8xf32> to vector<16x16x8xf32>
    %c1 = arith.constant 1 : index
    %c1_22 = arith.constant 1 : index
    %c0_23 = arith.constant 0 : index
    %28 = vector.load %arg7[%c1, %c1_22, %c0_23] : memref<18x18x8xf32, #tpu.memory_space<vmem>>, vector<16x16x8xf32>
    tpu.vector_store %arg7[%c1, %c1_22, %c0_23], %27 {strides = array<i32>} : memref<18x18x8xf32, #tpu.memory_space<vmem>>, vector<16x16x8xf32>,
    %c0_24 = arith.constant 0 : index
    %c0_25 = arith.constant 0 : index
    %c0_26 = arith.constant 0 : index
    %29 = vector.load %arg7[%c0_24, %c0_25, %c0_26] : memref<18x18x8xf32, #tpu.memory_space<vmem>>, vector<16x16x8xf32>
    %30 = vector.shape_cast %29 : vector<16x16x8xf32> to vector<256x8xf32>
    %c0_27 = arith.constant 0 : index
    %c1_28 = arith.constant 1 : index
    %c0_29 = arith.constant 0 : index
    %31 = vector.load %arg7[%c0_27, %c1_28, %c0_29] : memref<18x18x8xf32, #tpu.memory_space<vmem>>, vector<16x16x8xf32>
    %32 = vector.shape_cast %31 : vector<16x16x8xf32> to vector<256x8xf32>
    %c0_30 = arith.constant 0 : index
    %c2 = arith.constant 2 : index
    %c0_31 = arith.constant 0 : index
    %33 = vector.load %arg7[%c0_30, %c2, %c0_31] : memref<18x18x8xf32, #tpu.memory_space<vmem>>, vector<16x16x8xf32>
    %34 = vector.shape_cast %33 : vector<16x16x8xf32> to vector<256x8xf32>
    %c1_32 = arith.constant 1 : index
    %c0_33 = arith.constant 0 : index
    %c0_34 = arith.constant 0 : index
    %35 = vector.load %arg7[%c1_32, %c0_33, %c0_34] : memref<18x18x8xf32, #tpu.memory_space<vmem>>, vector<16x16x8xf32>
    %36 = vector.shape_cast %35 : vector<16x16x8xf32> to vector<256x8xf32>
    %c1_35 = arith.constant 1 : index
    %c1_36 = arith.constant 1 : index
    %c0_37 = arith.constant 0 : index
    %37 = vector.load %arg7[%c1_35, %c1_36, %c0_37] : memref<18x18x8xf32, #tpu.memory_space<vmem>>, vector<16x16x8xf32>
    %38 = vector.shape_cast %37 : vector<16x16x8xf32> to vector<256x8xf32>
    %c1_38 = arith.constant 1 : index
    %c2_39 = arith.constant 2 : index
    %c0_40 = arith.constant 0 : index
    %39 = vector.load %arg7[%c1_38, %c2_39, %c0_40] : memref<18x18x8xf32, #tpu.memory_space<vmem>>, vector<16x16x8xf32>
    %40 = vector.shape_cast %39 : vector<16x16x8xf32> to vector<256x8xf32>
    %c2_41 = arith.constant 2 : index
    %c0_42 = arith.constant 0 : index
    %c0_43 = arith.constant 0 : index
    %41 = vector.load %arg7[%c2_41, %c0_42, %c0_43] : memref<18x18x8xf32, #tpu.memory_space<vmem>>, vector<16x16x8xf32>
    %42 = vector.shape_cast %41 : vector<16x16x8xf32> to vector<256x8xf32>
    %c2_44 = arith.constant 2 : index
    %c1_45 = arith.constant 1 : index
    %c0_46 = arith.constant 0 : index
    %43 = vector.load %arg7[%c2_44, %c1_45, %c0_46] : memref<18x18x8xf32, #tpu.memory_space<vmem>>, vector<16x16x8xf32>
    %44 = vector.shape_cast %43 : vector<16x16x8xf32> to vector<256x8xf32>
    %c2_47 = arith.constant 2 : index
    %c2_48 = arith.constant 2 : index
    %c0_49 = arith.constant 0 : index
    %45 = vector.load %arg7[%c2_47, %c2_48, %c0_49] : memref<18x18x8xf32, #tpu.memory_space<vmem>>, vector<16x16x8xf32>
    %46 = vector.shape_cast %45 : vector<16x16x8xf32> to vector<256x8xf32>
    %47 = tpu.concatenate %30, %32, %34, %36, %38, %40, %42, %44, %46 in 1 : vector<256x8xf32>, vector<256x8xf32>, vector<256x8xf32>, vector<256x8xf32>, vector<256x8xf32>, vector<256x8xf32>, vector<256x8xf32>, vector<256x8xf32>, vector<256x8xf32> -> vector<256x72xf32>
    %c0_50 = arith.constant 0 : index
    %c0_51 = arith.constant 0 : index
    %48 = vector.load %arg4[%c0_50, %c0_51] : memref<72x4xf32, #tpu.memory_space<vmem>>, vector<72x4xf32>
    %cst_52 = arith.constant dense<0.000000e+00> : vector<256x4xf32>
    %49 = tpu.matmul %47, %48, %cst_52 {dimension_numbers = #tpu.dot_dimension_numbers<[1], [0], [0], [1], [0, 0, 1, 1], [], []>} : vector<256x72xf32>, vector<72x4xf32>, vector<256x4xf32> -> vector<256x4xf32>
    %c0_53 = arith.constant 0 : index
    %c0_54 = arith.constant 0 : index
    %50 = vector.load %arg5[%c0_53, %c0_54] : memref<1x4xf32, #tpu.memory_space<vmem>>, vector<1x4xf32>
    %51 = vector.broadcast %50 : vector<1x4xf32> to vector<256x4xf32>
    %52 = arith.addf %49, %51 : vector<256x4xf32>
    %53 = arith.addf %52, %1 : vector<256x4xf32>
    %c0_55 = arith.constant 0 : index
    %c0_56 = arith.constant 0 : index
    %c0_57 = arith.constant 0 : index
    %54 = vector.load %arg6[%c0_55, %c0_56, %c0_57] : memref<1x256x4xf32, #tpu.memory_space<vmem>>, vector<1x256x4xf32>
    %55 = vector.shape_cast %54 : vector<1x256x4xf32> to vector<256x4xf32>
    %56 = vector.shape_cast %53 : vector<256x4xf32> to vector<1x256x4xf32>
    tpu.vector_store %arg6[%c0_55, %c0_56, %c0_57], %56 {strides = array<i32>} : memref<1x256x4xf32, #tpu.memory_space<vmem>>, vector<1x256x4xf32>,
    return
  }
  func.func @transform_0(%arg0: i32) -> (i32, i32, i32) {
    %c0_i32 = arith.constant 0 : i32
    %c0_i32_0 = arith.constant 0 : i32
    %c0_i32_1 = arith.constant 0 : i32
    return %arg0, %c0_i32, %c0_i32_0 : i32, i32, i32
  }
  func.func @transform_1(%arg0: i32) -> (i32, i32) {
    %c0_i32 = arith.constant 0 : i32
    %c0_i32_0 = arith.constant 0 : i32
    %c0_i32_1 = arith.constant 0 : i32
    return %c0_i32, %c0_i32_0 : i32, i32
  }
  func.func @transform_2(%arg0: i32) -> (i32, i32) {
    %c0_i32 = arith.constant 0 : i32
    %c0_i32_0 = arith.constant 0 : i32
    %c0_i32_1 = arith.constant 0 : i32
    return %c0_i32, %c0_i32_0 : i32, i32
  }
  func.func @transform_3(%arg0: i32) -> (i32, i32) {
    %c0_i32 = arith.constant 0 : i32
    %c0_i32_0 = arith.constant 0 : i32
    %c0_i32_1 = arith.constant 0 : i32
    return %c0_i32, %c0_i32_0 : i32, i32
  }
  func.func @transform_4(%arg0: i32) -> (i32, i32) {
    %c0_i32 = arith.constant 0 : i32
    %c0_i32_0 = arith.constant 0 : i32
    %c0_i32_1 = arith.constant 0 : i32
    return %c0_i32, %c0_i32_0 : i32, i32
  }
  func.func @transform_5(%arg0: i32) -> (i32, i32, i32) {
    %c0_i32 = arith.constant 0 : i32
    %c0_i32_0 = arith.constant 0 : i32
    %c0_i32_1 = arith.constant 0 : i32
    return %arg0, %c0_i32, %c0_i32_0 : i32, i32, i32
  }
}

</mosaic_0001>

<llo_original>
// kernel: tpu_custom_call.1
$region0: #{tpu_custom_call.1}
  #allocation0 [shape = 'u32[]', space=smem, size = 0x4, offset = 0x4, fixed_abs, tag = 'smem constant byte address 0x4 - core index']
  #allocation1 [shape = 'u32[144,128]{1,0:T(1,128)}', space=vmem, size = 0x12000, scoped, tag = 'internal scratch']
  #allocation2 [shape = 'f32[18,18,8]{2,1,0:T(8,128)}', space=vmem, size = 0x36000, scoped, tag = 'scratch operand']
  %s0 = inlined_call_operand.vmem [shape: f32[2,256,4], index: 0, kind: input, shape index: {}]
  %s1 = inlined_call_operand.vmem [shape: f32[4,2], index: 1, kind: input, shape index: {}]
  %s2 = inlined_call_operand.vmem [shape: f32[1,2], index: 2, kind: input, shape index: {}]
  %s3 = inlined_call_operand.vmem [shape: f32[72,4], index: 3, kind: input, shape index: {}]
  %s4 = inlined_call_operand.vmem [shape: f32[1,4], index: 4, kind: input, shape index: {}]
  %s5 = inlined_call_operand.vmem [shape: f32[2,256,4], index: 5, kind: output, shape index: {}]
  %s6 = sld [smem:[#allocation0]]
  $region53: #{tpu_custom_call.1} parent=0
    _
  %s8 = ssub.s32 1, %s6
  %s9 = scalar_select 0, %s8, %s6
  loop: start=0, step=1, limit=4
  $region2: #{tpu_custom_call.1} parent=0 // loop_pre_header
    _
  $region3: #{tpu_custom_call.1} parent=0 // loop_header
    %s11 = sphi 0, %s15
    %p12 = scmp.ge.s32.totalorder %s11, 4
    %s21 = sphi 0, %s23
    %s24 = sphi 0, %s21
    %s25 = sphi 0, %s24
    %s41 = sphi 0, %s25
    %s45 = sphi 0, %s45
    %s47 = sphi 0, %s45
    %s48 = sphi 0, %s47
    %s62 = sphi 0, %s48
    %s66 = sphi 0, %s66
    %s68 = sphi 0, %s66
    %s69 = sphi 0, %s68
    %s83 = sphi 0, %s69
    %s87 = sphi 0, %s87
    %s89 = sphi 0, %s87
    %s90 = sphi 0, %s89
    %s104 = sphi 0, %s90
    %s108 = sphi 0, %s108
    %s110 = sphi 0, %s108
    %s111 = sphi 0, %s110
    %s125 = sphi 0, %s111
    %s131 = sphi 0, %s133
    %s134 = sphi 0, %s131
    %s135 = sphi 0, %s134
    %s151 = sphi 0, %s135
  $region4: #{tpu_custom_call.1} parent=0 // loop_header_branch
    %14 = sbr.rel (%p12) target = $region8
  $region5: #{tpu_custom_call.1} parent=0 // loop_body
    %s16 = ssub.s32 %s11, 1
    %s17 = ssub.s32 %s11, 2
    %s18 = sadd.s32 %s11, 1
    %s19 = ssub.s32 %s11, %s18
    %p20 = scmp.eq.s32.totalorder %s19, 0
    %s22 = sadd.s32 %s21, 1
    %s23 = scalar_select %p20, %s21, %s22
    %p26 = pneg %p20
    %p27 = scmp.eq.s32.totalorder %s11, 1
    %p28 = por %p26, %p27
    %p29 = scmp.ne.s32.totalorder %s21, %s24
    %p30 = scmp.eq.s32.totalorder %s11, 0
    %p31 = por %p29, %p30
    %p32 = scmp.ne.s32.totalorder %s21, %s24
    %p33 = scmp.eq.s32.totalorder %s16, 1
    %p34 = por %p32, %p33
    %p35 = scmp.ne.s32.totalorder %s24, %s25
    %p36 = scmp.eq.s32.totalorder %s16, 0
    %p37 = por %p35, %p36
    %p38 = scmp.ne.s32.totalorder %s24, %s25
    %p39 = scmp.eq.s32.totalorder %s17, 1
    %p40 = por %p38, %p39
    %p42 = scmp.ne.s32.totalorder %s25, %s41
    %p43 = scmp.eq.s32.totalorder %s17, 0
    %p44 = por %p42, %p43
    %s46 = sadd.s32 %s45, 1
    %p49 = scmp.eq.s32.totalorder %s11, 1
    %p50 = scmp.ne.s32.totalorder %s45, %s47
    %p51 = scmp.eq.s32.totalorder %s11, 0
    %p52 = por %p50, %p51
    %p53 = scmp.ne.s32.totalorder %s45, %s47
    %p54 = scmp.eq.s32.totalorder %s16, 1
    %p55 = por %p53, %p54
    %p56 = scmp.ne.s32.totalorder %s47, %s48
    %p57 = scmp.eq.s32.totalorder %s16, 0
    %p58 = por %p56, %p57
    %p59 = scmp.ne.s32.totalorder %s47, %s48
    %p60 = scmp.eq.s32.totalorder %s17, 1
    %p61 = por %p59, %p60
    %p63 = scmp.ne.s32.totalorder %s48, %s62
    %p64 = scmp.eq.s32.totalorder %s17, 0
    %p65 = por %p63, %p64
    %s67 = sadd.s32 %s66, 1
    %p70 = scmp.eq.s32.totalorder %s11, 1
    %p71 = scmp.ne.s32.totalorder %s66, %s68
    %p72 = scmp.eq.s32.totalorder %s11, 0
    %p73 = por %p71, %p72
    %p74 = scmp.ne.s32.totalorder %s66, %s68
    %p75 = scmp.eq.s32.totalorder %s16, 1
    %p76 = por %p74, %p75
    %p77 = scmp.ne.s32.totalorder %s68, %s69
    %p78 = scmp.eq.s32.totalorder %s16, 0
    %p79 = por %p77, %p78
    %p80 = scmp.ne.s32.totalorder %s68, %s69
    %p81 = scmp.eq.s32.totalorder %s17, 1
    %p82 = por %p80, %p81
    %p84 = scmp.ne.s32.totalorder %s69, %s83
    %p85 = scmp.eq.s32.totalorder %s17, 0
    %p86 = por %p84, %p85
    %s88 = sadd.s32 %s87, 1
    %p91 = scmp.eq.s32.totalorder %s11, 1
    %p92 = scmp.ne.s32.totalorder %s87, %s89
    %p93 = scmp.eq.s32.totalorder %s11, 0
    %p94 = por %p92, %p93
    %p95 = scmp.ne.s32.totalorder %s87, %s89
    %p96 = scmp.eq.s32.totalorder %s16, 1
    %p97 = por %p95, %p96
    %p98 = scmp.ne.s32.totalorder %s89, %s90
    %p99 = scmp.eq.s32.totalorder %s16, 0
    %p100 = por %p98, %p99
    %p101 = scmp.ne.s32.totalorder %s89, %s90
    %p102 = scmp.eq.s32.totalorder %s17, 1
    %p103 = por %p101, %p102
    %p105 = scmp.ne.s32.totalorder %s90, %s104
    %p106 = scmp.eq.s32.totalorder %s17, 0
    %p107 = por %p105, %p106
    %s109 = sadd.s32 %s108, 1
    %p112 = scmp.eq.s32.totalorder %s11, 1
    %p113 = scmp.ne.s32.totalorder %s108, %s110
    %p114 = scmp.eq.s32.totalorder %s11, 0
    %p115 = por %p113, %p114
    %p116 = scmp.ne.s32.totalorder %s108, %s110
    %p117 = scmp.eq.s32.totalorder %s16, 1
    %p118 = por %p116, %p117
    %p119 = scmp.ne.s32.totalorder %s110, %s111
    %p120 = scmp.eq.s32.totalorder %s16, 0
    %p121 = por %p119, %p120
    %p122 = scmp.ne.s32.totalorder %s110, %s111
    %p123 = scmp.eq.s32.totalorder %s17, 1
    %p124 = por %p122, %p123
    %p126 = scmp.ne.s32.totalorder %s111, %s125
    %p127 = scmp.eq.s32.totalorder %s17, 0
    %p128 = por %p126, %p127
    %s129 = ssub.s32 %s11, %s18
    %p130 = scmp.eq.s32.totalorder %s129, 0
    %s132 = sadd.s32 %s131, 1
    %s133 = scalar_select %p130, %s131, %s132
    %p136 = pneg %p130
    %p137 = scmp.eq.s32.totalorder %s11, 1
    %p138 = por %p136, %p137
    %p139 = scmp.ne.s32.totalorder %s131, %s134
    %p140 = scmp.eq.s32.totalorder %s11, 0
    %p141 = por %p139, %p140
    %p142 = scmp.ne.s32.totalorder %s131, %s134
    %p143 = scmp.eq.s32.totalorder %s16, 1
    %p144 = por %p142, %p143
    %p145 = scmp.ne.s32.totalorder %s134, %s135
    %p146 = scmp.eq.s32.totalorder %s16, 0
    %p147 = por %p145, %p146
    %p148 = scmp.ne.s32.totalorder %s134, %s135
    %p149 = scmp.eq.s32.totalorder %s17, 1
    %p150 = por %p148, %p149
    %p152 = scmp.ne.s32.totalorder %s135, %s151
    %p153 = scmp.eq.s32.totalorder %s17, 0
    %p154 = por %p152, %p153
    %p155 = scmp.le.s32.totalorder 1, %s11
    %p156 = scmp.lt.s32.totalorder %s11, 3
    %p157 = pnand %p155, %p156
    %p158 = pneg %p157
    // Predicated region
    $region9: #{tpu_custom_call.1} parent=5 // pred_check
      _
    $region10: #{tpu_custom_call.1} parent=5 // pred_check_branch
      %160 = sbr.rel (%p157) target = $region12
    $region11: #{tpu_custom_call.1} parent=5 // pred_region
      %s161 = ssub.s32 %s11, 1
      // Predicated region
      $region13: #{tpu_custom_call.1} parent=11 // pred_check
        %p162 = pneg %p58
      $region14: #{tpu_custom_call.1} parent=11 // pred_check_branch
        %164 = sbr.rel (%p162) target = $region16
      $region15: #{tpu_custom_call.1} parent=11 // pred_region
        _
      $region16: #{tpu_custom_call.1} parent=11 // pred_fallthru
        _
      // Predicated region
      $region17: #{tpu_custom_call.1} parent=11 // pred_check
        %p165 = pneg %p79
      $region18: #{tpu_custom_call.1} parent=11 // pred_check_branch
        %167 = sbr.rel (%p165) target = $region20
      $region19: #{tpu_custom_call.1} parent=11 // pred_region
        _
      $region20: #{tpu_custom_call.1} parent=11 // pred_fallthru
        _
      // Predicated region
      $region21: #{tpu_custom_call.1} parent=11 // pred_check
        %p168 = pneg %p100
      $region22: #{tpu_custom_call.1} parent=11 // pred_check_branch
        %170 = sbr.rel (%p168) target = $region24
      $region23: #{tpu_custom_call.1} parent=11 // pred_region
        _
      $region24: #{tpu_custom_call.1} parent=11 // pred_fallthru
        _
      // Predicated region
      $region25: #{tpu_custom_call.1} parent=11 // pred_check
        %p171 = pneg %p121
      $region26: #{tpu_custom_call.1} parent=11 // pred_check_branch
        %173 = sbr.rel (%p171) target = $region28
      $region27: #{tpu_custom_call.1} parent=11 // pred_region
        _
      $region28: #{tpu_custom_call.1} parent=11 // pred_fallthru
        _
    $region12: #{tpu_custom_call.1} parent=5 // pred_fallthru
      _
    %p174 = scmp.lt.s32.totalorder %s11, 2
    // Predicated region
    $region29: #{tpu_custom_call.1} parent=5 // pred_check
      %p175 = pneg %p174
    $region30: #{tpu_custom_call.1} parent=5 // pred_check_branch
      %177 = sbr.rel (%p175) target = $region32
    $region31: #{tpu_custom_call.1} parent=5 // pred_region
      // Predicated region
      $region33: #{tpu_custom_call.1} parent=31 // pred_check
        %p178 = pneg %p31
      $region34: #{tpu_custom_call.1} parent=31 // pred_check_branch
        %180 = sbr.rel (%p178) target = $region36
      $region35: #{tpu_custom_call.1} parent=31 // pred_region
        %p181 = scmp.lt.s32.totalorder %s11, 1
        %s182 = scalar_select %p181, %s11, 1
        %s183 = smul.addr %s182, 32
        %s184 = smul.addr %s183, 8
        %s185 = scalar_lea.vmem %s0, %s184
      $region36: #{tpu_custom_call.1} parent=31 // pred_fallthru
        _
    $region32: #{tpu_custom_call.1} parent=5 // pred_fallthru
      _
    %p186 = scmp.le.s32.totalorder 1, %s11
    %p187 = scmp.lt.s32.totalorder %s11, 3
    %p188 = pnand %p186, %p187
    %p189 = pneg %p188
    // Predicated region
    $region37: #{tpu_custom_call.1} parent=5 // pred_check
      _
    $region38: #{tpu_custom_call.1} parent=5 // pred_check_branch
      %191 = sbr.rel (%p188) target = $region40
    $region39: #{tpu_custom_call.1} parent=5 // pred_region
      %s192 = ssub.s32 %s11, 1
      %p193 = scmp.lt.s32.totalorder %s16, 1
      %s194 = scalar_select %p193, %s16, 1
      %s195 = smul.addr %s194, 32
      %s196 = smul.addr %s195, 8
      %s197 = scalar_lea.vmem %s0, %s196
      %p198 = pneg %p37
      %p199 = pneg %p34
      %p200 = pneg %p58
      %p201 = pneg %p55
      %p202 = pneg %p79
      %p203 = pneg %p76
      %p204 = pneg %p100
      %p205 = pneg %p97
      %p206 = pneg %p121
      %p207 = pneg %p118
      %p208 = pneg %p147
      %p209 = pneg %p144
      %p210 = scmp.lt.s32.totalorder %s16, 1
      %s211 = scalar_select %p210, %s16, 1
      %s212 = smul.addr %s211, 32
      %s213 = smul.addr %s212, 8
      %s214 = scalar_lea.vmem %s5, %s213
      %p215 = scmp.lt.s32.totalorder %s16, 1
      %s216 = scalar_select %p215, %s16, 1
      %s217 = smul.addr %s216, 32
      %s218 = smul.addr %s217, 8
      %s219 = scalar_lea.vmem %s0, %s218
      %p220 = scmp.lt.s32.totalorder %s16, 1
      %s221 = scalar_select %p220, %s16, 1
      %s222 = smul.addr %s221, 32
      %s223 = smul.addr %s222, 8
      %s224 = scalar_lea.vmem %s5, %s223
      %v225 = vld [vmem:[%s219] sm:$0xff]
      %v226 = vld [vmem:[%s219 + $0x8] sm:$0xff]
      %v227 = vld [vmem:[%s219 + $0x10] sm:$0xff]
      %v228 = vld [vmem:[%s219 + $0x18] sm:$0xff]
      %v229 = vld [vmem:[%s219 + $0x20] sm:$0xff]
      %v230 = vld [vmem:[%s219 + $0x28] sm:$0xff]
      %v231 = vld [vmem:[%s219 + $0x30] sm:$0xff]
      %v232 = vld [vmem:[%s219 + $0x38] sm:$0xff]
      %v233 = vld [vmem:[%s219 + $0x40] sm:$0xff]
      %v234 = vld [vmem:[%s219 + $0x48] sm:$0xff]
      %v235 = vld [vmem:[%s219 + $0x50] sm:$0xff]
      %v236 = vld [vmem:[%s219 + $0x58] sm:$0xff]
      %v237 = vld [vmem:[%s219 + $0x60] sm:$0xff]
      %v238 = vld [vmem:[%s219 + $0x68] sm:$0xff]
      %v239 = vld [vmem:[%s219 + $0x70] sm:$0xff]
      %v240 = vld [vmem:[%s219 + $0x78] sm:$0xff]
      %v241 = vld [vmem:[%s219 + $0x80] sm:$0xff]
      %v242 = vld [vmem:[%s219 + $0x88] sm:$0xff]
      %v243 = vld [vmem:[%s219 + $0x90] sm:$0xff]
      %v244 = vld [vmem:[%s219 + $0x98] sm:$0xff]
      %v245 = vld [vmem:[%s219 + $0xa0] sm:$0xff]
      %v246 = vld [vmem:[%s219 + $0xa8] sm:$0xff]
      %v247 = vld [vmem:[%s219 + $0xb0] sm:$0xff]
      %v248 = vld [vmem:[%s219 + $0xb8] sm:$0xff]
      %v249 = vld [vmem:[%s219 + $0xc0] sm:$0xff]
      %v250 = vld [vmem:[%s219 + $0xc8] sm:$0xff]
      %v251 = vld [vmem:[%s219 + $0xd0] sm:$0xff]
      %v252 = vld [vmem:[%s219 + $0xd8] sm:$0xff]
      %v253 = vld [vmem:[%s219 + $0xe0] sm:$0xff]
      %v254 = vld [vmem:[%s219 + $0xe8] sm:$0xff]
      %v255 = vld [vmem:[%s219 + $0xf0] sm:$0xff]
      %v256 = vld [vmem:[%s219 + $0xf8] sm:$0xff]
      %v257 = vld [vmem:[%s1] sm:$0xf]
      %v258 = vld [vmem:[%s2] sm:$0x1]
      %v260 = vlaneseq
      %v261 = vshrl.u32 %v260, 7
      %v262 = vsub.s32 0, %v261
      %v263 = vrot.slane %v258, %v262
      %vm265 = vcmask 31744
      %v267 = vsel %vm265, %v225, 0
      %v270 = vsel %vm265, %v226, 0
      %v273 = vsel %vm265, %v227, 0
      %v276 = vsel %vm265, %v228, 0
      %v279 = vsel %vm265, %v229, 0
      %v282 = vsel %vm265, %v230, 0
      %v285 = vsel %vm265, %v231, 0
      %v288 = vsel %vm265, %v232, 0
      %v291 = vsel %vm265, %v233, 0
      %v294 = vsel %vm265, %v234, 0
      %v297 = vsel %vm265, %v235, 0
      %v300 = vsel %vm265, %v236, 0
      %v303 = vsel %vm265, %v237, 0
      %v306 = vsel %vm265, %v238, 0
      %v309 = vsel %vm265, %v239, 0
      %v312 = vsel %vm265, %v240, 0
      %v315 = vsel %vm265, %v241, 0
      %v318 = vsel %vm265, %v242, 0
      %v321 = vsel %vm265, %v243, 0
      %v324 = vsel %vm265, %v244, 0
      %v327 = vsel %vm265, %v245, 0
      %v330 = vsel %vm265, %v246, 0
      %v333 = vsel %vm265, %v247, 0
      %v336 = vsel %vm265, %v248, 0
      %v339 = vsel %vm265, %v249, 0
      %v342 = vsel %vm265, %v250, 0
      %v345 = vsel %vm265, %v251, 0
      %v348 = vsel %vm265, %v252, 0
      %v351 = vsel %vm265, %v253, 0
      %v354 = vsel %vm265, %v254, 0
      %v357 = vsel %vm265, %v255, 0
      %v360 = vsel %vm265, %v256, 0
      %vm362 = vcmask 1043456
      %v364 = vsel %vm362, %v257, 0
      %366 = vmatprep.subr.mxu0 0.0
      %367 = vmatpush1.msra.mxu0 %v364
      %368 = vmatprep.subr.mxu0 0.0
      %369 = vmatpush1.msra.mxu0 0.0
      %370 = vmatprep.subr.mxu0 0.0
      %371 = vmatpush1.msra.mxu0 0.0
      %372 = vmatprep.subr.mxu0 0.0
      %373 = vmatpush1.msra.mxu0 0.0
      %374 = vmatprep.subr.mxu0 0.0
      %375 = vmatpush1.msra.mxu0 0.0
      %376 = vmatprep.subr.mxu0 0.0
      %377 = vmatpush1.msra.mxu0 0.0
      %378 = vmatprep.subr.mxu0 0.0
      %379 = vmatpush1.msra.mxu0 0.0
      %380 = vmatprep.subr.mxu0 0.0
      %381 = vmatpush1.msra.mxu0 0.0
      %382 = vmatprep.subr.mxu0 0.0
      %383 = vmatpush1.msra.mxu0 0.0
      %384 = vmatprep.subr.mxu0 0.0
      %385 = vmatpush1.msra.mxu0 0.0
      %386 = vmatprep.subr.mxu0 0.0
      %387 = vmatpush1.msra.mxu0 0.0
      %388 = vmatprep.subr.mxu0 0.0
      %389 = vmatpush1.msra.mxu0 0.0
      %390 = vmatprep.subr.mxu0 0.0
      %391 = vmatpush1.msra.mxu0 0.0
      %392 = vmatprep.subr.mxu0 0.0
      %393 = vmatpush1.msra.mxu0 0.0
      %394 = vmatprep.subr.mxu0 0.0
      %395 = vmatpush1.msra.mxu0 0.0
      %396 = vmatprep.subr.mxu0 0.0
      %397 = vmatpush1.msra.mxu0 0.0
      %398 = vmatprep.subr.mxu0 0.0
      %399 = vmatpush1.msra.mxu0 0.0
      %400 = vmatprep.subr.mxu0 0.0
      %401 = vmatpush1.msra.mxu0 0.0
      %402 = vmatprep.subr.mxu0 0.0
      %403 = vmatpush1.msra.mxu0 0.0
      %404 = vmatprep.subr.mxu0 0.0
      %405 = vmatpush1.msra.mxu0 0.0
      %406 = vmatprep.subr.mxu0 0.0
      %407 = vmatpush1.msra.mxu0 0.0
      %408 = vmatprep.subr.mxu0 0.0
      %409 = vmatpush1.msra.mxu0 0.0
      %410 = vmatprep.subr.mxu0 0.0
      %411 = vmatpush1.msra.mxu0 0.0
      %412 = vmatprep.subr.mxu0 0.0
      %413 = vmatpush1.msra.mxu0 0.0
      %414 = vmatprep.subr.mxu0 0.0
      %415 = vmatpush1.msra.mxu0 0.0
      %416 = vmatprep.subr.mxu0 0.0
      %417 = vmatpush1.msra.mxu0 0.0
      %418 = vmatprep.subr.mxu0 0.0
      %419 = vmatpush1.msra.mxu0 0.0
      %420 = vmatprep.subr.mxu0 0.0
      %421 = vmatpush1.msra.mxu0 0.0
      %422 = vmatprep.subr.mxu0 0.0
      %423 = vmatpush1.msra.mxu0 0.0
      %424 = vmatprep.subr.mxu0 0.0
      %425 = vmatpush1.msra.mxu0 0.0
      %426 = vmatprep.subr.mxu0 0.0
      %427 = vmatpush1.msra.mxu0 0.0
      %428 = vmatprep.subr.mxu0 0.0
      %429 = vmatpush1.msra.mxu0 0.0
      %430 = vmatprep.mubr.f32.mxu0 0.0
      %431 = vmatmul.mubr.f32.gmra.mrb[0].mxu0 %v267
      %v432 = vpop.f32.mrb[0].mxu0
      %v433 = vadd.f32 %v263, %v432
      %v434 = vpop.f32.mrb[0].mxu0
      %435 = vmatprep.mubr.f32.mxu0 0.0
      %436 = vmatmul.mubr.f32.gmra.mrb[0].mxu0 %v270
      %v437 = vpop.f32.mrb[0].mxu0
      %v438 = vadd.f32 %v263, %v437
      %v439 = vpop.f32.mrb[0].mxu0
      %440 = vmatprep.mubr.f32.mxu0 0.0
      %441 = vmatmul.mubr.f32.gmra.mrb[0].mxu0 %v273
      %v442 = vpop.f32.mrb[0].mxu0
      %v443 = vadd.f32 %v263, %v442
      %v444 = vpop.f32.mrb[0].mxu0
      %445 = vmatprep.mubr.f32.mxu0 0.0
      %446 = vmatmul.mubr.f32.gmra.mrb[0].mxu0 %v276
      %v447 = vpop.f32.mrb[0].mxu0
      %v448 = vadd.f32 %v263, %v447
      %v449 = vpop.f32.mrb[0].mxu0
      %450 = vmatprep.mubr.f32.mxu0 0.0
      %451 = vmatmul.mubr.f32.gmra.mrb[0].mxu0 %v279
      %v452 = vpop.f32.mrb[0].mxu0
      %v453 = vadd.f32 %v263, %v452
      %v454 = vpop.f32.mrb[0].mxu0
      %455 = vmatprep.mubr.f32.mxu0 0.0
      %456 = vmatmul.mubr.f32.gmra.mrb[0].mxu0 %v282
      %v457 = vpop.f32.mrb[0].mxu0
      %v458 = vadd.f32 %v263, %v457
      %v459 = vpop.f32.mrb[0].mxu0
      %460 = vmatprep.mubr.f32.mxu0 0.0
      %461 = vmatmul.mubr.f32.gmra.mrb[0].mxu0 %v285
      %v462 = vpop.f32.mrb[0].mxu0
      %v463 = vadd.f32 %v263, %v462
      %v464 = vpop.f32.mrb[0].mxu0
      %465 = vmatprep.mubr.f32.mxu0 0.0
      %466 = vmatmul.mubr.f32.gmra.mrb[0].mxu0 %v288
      %v467 = vpop.f32.mrb[0].mxu0
      %v468 = vadd.f32 %v263, %v467
      %v469 = vpop.f32.mrb[0].mxu0
      %470 = vmatprep.mubr.f32.mxu0 0.0
      %471 = vmatmul.mubr.f32.gmra.mrb[0].mxu0 %v291
      %v472 = vpop.f32.mrb[0].mxu0
      %v473 = vadd.f32 %v263, %v472
      %v474 = vpop.f32.mrb[0].mxu0
      %475 = vmatprep.mubr.f32.mxu0 0.0
      %476 = vmatmul.mubr.f32.gmra.mrb[0].mxu0 %v294
      %v477 = vpop.f32.mrb[0].mxu0
      %v478 = vadd.f32 %v263, %v477
      %v479 = vpop.f32.mrb[0].mxu0
      %480 = vmatprep.mubr.f32.mxu0 0.0
      %481 = vmatmul.mubr.f32.gmra.mrb[0].mxu0 %v297
      %v482 = vpop.f32.mrb[0].mxu0
      %v483 = vadd.f32 %v263, %v482
      %v484 = vpop.f32.mrb[0].mxu0
      %485 = vmatprep.mubr.f32.mxu0 0.0
      %486 = vmatmul.mubr.f32.gmra.mrb[0].mxu0 %v300
      %v487 = vpop.f32.mrb[0].mxu0
      %v488 = vadd.f32 %v263, %v487
      %v489 = vpop.f32.mrb[0].mxu0
      %490 = vmatprep.mubr.f32.mxu0 0.0
      %491 = vmatmul.mubr.f32.gmra.mrb[0].mxu0 %v303
      %v492 = vpop.f32.mrb[0].mxu0
      %v493 = vadd.f32 %v263, %v492
      %v494 = vpop.f32.mrb[0].mxu0
      %495 = vmatprep.mubr.f32.mxu0 0.0
      %496 = vmatmul.mubr.f32.gmra.mrb[0].mxu0 %v306
      %v497 = vpop.f32.mrb[0].mxu0
      %v498 = vadd.f32 %v263, %v497
      %v499 = vpop.f32.mrb[0].mxu0
      %500 = vmatprep.mubr.f32.mxu0 0.0
      %501 = vmatmul.mubr.f32.gmra.mrb[0].mxu0 %v309
      %v502 = vpop.f32.mrb[0].mxu0
      %v503 = vadd.f32 %v263, %v502
      %v504 = vpop.f32.mrb[0].mxu0
      %505 = vmatprep.mubr.f32.mxu0 0.0
      %506 = vmatmul.mubr.f32.gmra.mrb[0].mxu0 %v312
      %v507 = vpop.f32.mrb[0].mxu0
      %v508 = vadd.f32 %v263, %v507
      %v509 = vpop.f32.mrb[0].mxu0
      %510 = vmatprep.mubr.f32.mxu0 0.0
      %511 = vmatmul.mubr.f32.gmra.mrb[0].mxu0 %v315
      %v512 = vpop.f32.mrb[0].mxu0
      %v513 = vadd.f32 %v263, %v512
      %v514 = vpop.f32.mrb[0].mxu0
      %515 = vmatprep.mubr.f32.mxu0 0.0
      %516 = vmatmul.mubr.f32.gmra.mrb[0].mxu0 %v318
      %v517 = vpop.f32.mrb[0].mxu0
      %v518 = vadd.f32 %v263, %v517
      %v519 = vpop.f32.mrb[0].mxu0
      %520 = vmatprep.mubr.f32.mxu0 0.0
      %521 = vmatmul.mubr.f32.gmra.mrb[0].mxu0 %v321
      %v522 = vpop.f32.mrb[0].mxu0
      %v523 = vadd.f32 %v263, %v522
      %v524 = vpop.f32.mrb[0].mxu0
      %525 = vmatprep.mubr.f32.mxu0 0.0
      %526 = vmatmul.mubr.f32.gmra.mrb[0].mxu0 %v324
      %v527 = vpop.f32.mrb[0].mxu0
      %v528 = vadd.f32 %v263, %v527
      %v529 = vpop.f32.mrb[0].mxu0
      %530 = vmatprep.mubr.f32.mxu0 0.0
      %531 = vmatmul.mubr.f32.gmra.mrb[0].mxu0 %v327
      %v532 = vpop.f32.mrb[0].mxu0
      %v533 = vadd.f32 %v263, %v532
      %v534 = vpop.f32.mrb[0].mxu0
      %535 = vmatprep.mubr.f32.mxu0 0.0
      %536 = vmatmul.mubr.f32.gmra.mrb[0].mxu0 %v330
      %v537 = vpop.f32.mrb[0].mxu0
      %v538 = vadd.f32 %v263, %v537
      %v539 = vpop.f32.mrb[0].mxu0
      %540 = vmatprep.mubr.f32.mxu0 0.0
      %541 = vmatmul.mubr.f32.gmra.mrb[0].mxu0 %v333
      %v542 = vpop.f32.mrb[0].mxu0
      %v543 = vadd.f32 %v263, %v542
      %v544 = vpop.f32.mrb[0].mxu0
      %545 = vmatprep.mubr.f32.mxu0 0.0
      %546 = vmatmul.mubr.f32.gmra.mrb[0].mxu0 %v336
      %v547 = vpop.f32.mrb[0].mxu0
      %v548 = vadd.f32 %v263, %v547
      %v549 = vpop.f32.mrb[0].mxu0
      %550 = vmatprep.mubr.f32.mxu0 0.0
      %551 = vmatmul.mubr.f32.gmra.mrb[0].mxu0 %v339
      %v552 = vpop.f32.mrb[0].mxu0
      %v553 = vadd.f32 %v263, %v552
      %v554 = vpop.f32.mrb[0].mxu0
      %555 = vmatprep.mubr.f32.mxu0 0.0
      %556 = vmatmul.mubr.f32.gmra.mrb[0].mxu0 %v342
      %v557 = vpop.f32.mrb[0].mxu0
      %v558 = vadd.f32 %v263, %v557
      %v559 = vpop.f32.mrb[0].mxu0
      %560 = vmatprep.mubr.f32.mxu0 0.0
      %561 = vmatmul.mubr.f32.gmra.mrb[0].mxu0 %v345
      %v562 = vpop.f32.mrb[0].mxu0
      %v563 = vadd.f32 %v263, %v562
      %v564 = vpop.f32.mrb[0].mxu0
      %565 = vmatprep.mubr.f32.mxu0 0.0
      %566 = vmatmul.mubr.f32.gmra.mrb[0].mxu0 %v348
      %v567 = vpop.f32.mrb[0].mxu0
      %v568 = vadd.f32 %v263, %v567
      %v569 = vpop.f32.mrb[0].mxu0
      %570 = vmatprep.mubr.f32.mxu0 0.0
      %571 = vmatmul.mubr.f32.gmra.mrb[0].mxu0 %v351
      %v572 = vpop.f32.mrb[0].mxu0
      %v573 = vadd.f32 %v263, %v572
      %v574 = vpop.f32.mrb[0].mxu0
      %575 = vmatprep.mubr.f32.mxu0 0.0
      %576 = vmatmul.mubr.f32.gmra.mrb[0].mxu0 %v354
      %v577 = vpop.f32.mrb[0].mxu0
      %v578 = vadd.f32 %v263, %v577
      %v579 = vpop.f32.mrb[0].mxu0
      %580 = vmatprep.mubr.f32.mxu0 0.0
      %581 = vmatmul.mubr.f32.gmra.mrb[0].mxu0 %v357
      %v582 = vpop.f32.mrb[0].mxu0
      %v583 = vadd.f32 %v263, %v582
      %v584 = vpop.f32.mrb[0].mxu0
      %585 = vmatprep.mubr.f32.mxu0 0.0
      %586 = vmatmul.mubr.f32.gmra.mrb[0].mxu0 %v360
      %v587 = vpop.f32.mrb[0].mxu0
      %v588 = vadd.f32 %v263, %v587
      %v589 = vpop.f32.mrb[0].mxu0
      %590 = vdwg.mxu0
      %v591 = vxor.u32 %v433, 2147483648
      %v592 = vxor.u32 %v438, 2147483648
      %v593 = vxor.u32 %v443, 2147483648
      %v594 = vxor.u32 %v448, 2147483648
      %v595 = vxor.u32 %v453, 2147483648
      %v596 = vxor.u32 %v458, 2147483648
      %v597 = vxor.u32 %v463, 2147483648
      %v598 = vxor.u32 %v468, 2147483648
      %v599 = vxor.u32 %v473, 2147483648
      %v600 = vxor.u32 %v478, 2147483648
      %v601 = vxor.u32 %v483, 2147483648
      %v602 = vxor.u32 %v488, 2147483648
      %v603 = vxor.u32 %v493, 2147483648
      %v604 = vxor.u32 %v498, 2147483648
      %v605 = vxor.u32 %v503, 2147483648
      %v606 = vxor.u32 %v508, 2147483648
      %v607 = vxor.u32 %v513, 2147483648
      %v608 = vxor.u32 %v518, 2147483648
      %v609 = vxor.u32 %v523, 2147483648
      %v610 = vxor.u32 %v528, 2147483648
      %v611 = vxor.u32 %v533, 2147483648
      %v612 = vxor.u32 %v538, 2147483648
      %v613 = vxor.u32 %v543, 2147483648
      %v614 = vxor.u32 %v548, 2147483648
      %v615 = vxor.u32 %v553, 2147483648
      %v616 = vxor.u32 %v558, 2147483648
      %v617 = vxor.u32 %v563, 2147483648
      %v618 = vxor.u32 %v568, 2147483648
      %v619 = vxor.u32 %v573, 2147483648
      %v620 = vxor.u32 %v578, 2147483648
      %v621 = vxor.u32 %v583, 2147483648
      %v622 = vxor.u32 %v588, 2147483648
      %v623 = vmul.f32 %v591, 1.442695
      %v624 = vpow.pop %v623
      %v625 = vmul.f32 %v592, 1.442695
      %v626 = vpow.pop %v625
      %v627 = vmul.f32 %v593, 1.442695
      %v628 = vpow.pop %v627
      %v629 = vmul.f32 %v594, 1.442695
      %v630 = vpow.pop %v629
      %v631 = vmul.f32 %v595, 1.442695
      %v632 = vpow.pop %v631
      %v633 = vmul.f32 %v596, 1.442695
      %v634 = vpow.pop %v633
      %v635 = vmul.f32 %v597, 1.442695
      %v636 = vpow.pop %v635
      %v637 = vmul.f32 %v598, 1.442695
      %v638 = vpow.pop %v637
      %v639 = vmul.f32 %v599, 1.442695
      %v640 = vpow.pop %v639
      %v641 = vmul.f32 %v600, 1.442695
      %v642 = vpow.pop %v641
      %v643 = vmul.f32 %v601, 1.442695
      %v644 = vpow.pop %v643
      %v645 = vmul.f32 %v602, 1.442695
      %v646 = vpow.pop %v645
      %v647 = vmul.f32 %v603, 1.442695
      %v648 = vpow.pop %v647
      %v649 = vmul.f32 %v604, 1.442695
      %v650 = vpow.pop %v649
      %v651 = vmul.f32 %v605, 1.442695
      %v652 = vpow.pop %v651
      %v653 = vmul.f32 %v606, 1.442695
      %v654 = vpow.pop %v653
      %v655 = vmul.f32 %v607, 1.442695
      %v656 = vpow.pop %v655
      %v657 = vmul.f32 %v608, 1.442695
      %v658 = vpow.pop %v657
      %v659 = vmul.f32 %v609, 1.442695
      %v660 = vpow.pop %v659
      %v661 = vmul.f32 %v610, 1.442695
      %v662 = vpow.pop %v661
      %v663 = vmul.f32 %v611, 1.442695
      %v664 = vpow.pop %v663
      %v665 = vmul.f32 %v612, 1.442695
      %v666 = vpow.pop %v665
      %v667 = vmul.f32 %v613, 1.442695
      %v668 = vpow.pop %v667
      %v669 = vmul.f32 %v614, 1.442695
      %v670 = vpow.pop %v669
      %v671 = vmul.f32 %v615, 1.442695
      %v672 = vpow.pop %v671
      %v673 = vmul.f32 %v616, 1.442695
      %v674 = vpow.pop %v673
      %v675 = vmul.f32 %v617, 1.442695
      %v676 = vpow.pop %v675
      %v677 = vmul.f32 %v618, 1.442695
      %v678 = vpow.pop %v677
      %v679 = vmul.f32 %v619, 1.442695
      %v680 = vpow.pop %v679
      %v681 = vmul.f32 %v620, 1.442695
      %v682 = vpow.pop %v681
      %v683 = vmul.f32 %v621, 1.442695
      %v684 = vpow.pop %v683
      %v685 = vmul.f32 %v622, 1.442695
      %v686 = vpow.pop %v685
      %v687 = vadd.f32 %v624, 1.0
      %v688 = vadd.f32 %v626, 1.0
      %v689 = vadd.f32 %v628, 1.0
      %v690 = vadd.f32 %v630, 1.0
      %v691 = vadd.f32 %v632, 1.0
      %v692 = vadd.f32 %v634, 1.0
      %v693 = vadd.f32 %v636, 1.0
      %v694 = vadd.f32 %v638, 1.0
      %v695 = vadd.f32 %v640, 1.0
      %v696 = vadd.f32 %v642, 1.0
      %v697 = vadd.f32 %v644, 1.0
      %v698 = vadd.f32 %v646, 1.0
      %v699 = vadd.f32 %v648, 1.0
      %v700 = vadd.f32 %v650, 1.0
      %v701 = vadd.f32 %v652, 1.0
      %v702 = vadd.f32 %v654, 1.0
      %v703 = vadd.f32 %v656, 1.0
      %v704 = vadd.f32 %v658, 1.0
      %v705 = vadd.f32 %v660, 1.0
      %v706 = vadd.f32 %v662, 1.0
      %v707 = vadd.f32 %v664, 1.0
      %v708 = vadd.f32 %v666, 1.0
      %v709 = vadd.f32 %v668, 1.0
      %v710 = vadd.f32 %v670, 1.0
      %v711 = vadd.f32 %v672, 1.0
      %v712 = vadd.f32 %v674, 1.0
      %v713 = vadd.f32 %v676, 1.0
      %v714 = vadd.f32 %v678, 1.0
      %v715 = vadd.f32 %v680, 1.0
      %v716 = vadd.f32 %v682, 1.0
      %v717 = vadd.f32 %v684, 1.0
      %v718 = vadd.f32 %v686, 1.0
      %v719 = vrcp.pop %v687
      %v720 = vmul.f32 1.0, %v719
      %v721 = vrcp.pop %v688
      %v722 = vmul.f32 1.0, %v721
      %v723 = vrcp.pop %v689
      %v724 = vmul.f32 1.0, %v723
      %v725 = vrcp.pop %v690
      %v726 = vmul.f32 1.0, %v725
      %v727 = vrcp.pop %v691
      %v728 = vmul.f32 1.0, %v727
      %v729 = vrcp.pop %v692
      %v730 = vmul.f32 1.0, %v729
      %v731 = vrcp.pop %v693
      %v732 = vmul.f32 1.0, %v731
      %v733 = vrcp.pop %v694
      %v734 = vmul.f32 1.0, %v733
      %v735 = vrcp.pop %v695
      %v736 = vmul.f32 1.0, %v735
      %v737 = vrcp.pop %v696
      %v738 = vmul.f32 1.0, %v737
      %v739 = vrcp.pop %v697
      %v740 = vmul.f32 1.0, %v739
      %v741 = vrcp.pop %v698
      %v742 = vmul.f32 1.0, %v741
      %v743 = vrcp.pop %v699
      %v744 = vmul.f32 1.0, %v743
      %v745 = vrcp.pop %v700
      %v746 = vmul.f32 1.0, %v745
      %v747 = vrcp.pop %v701
      %v748 = vmul.f32 1.0, %v747
      %v749 = vrcp.pop %v702
      %v750 = vmul.f32 1.0, %v749
      %v751 = vrcp.pop %v703
      %v752 = vmul.f32 1.0, %v751
      %v753 = vrcp.pop %v704
      %v754 = vmul.f32 1.0, %v753
      %v755 = vrcp.pop %v705
      %v756 = vmul.f32 1.0, %v755
      %v757 = vrcp.pop %v706
      %v758 = vmul.f32 1.0, %v757
      %v759 = vrcp.pop %v707
      %v760 = vmul.f32 1.0, %v759
      %v761 = vrcp.pop %v708
      %v762 = vmul.f32 1.0, %v761
      %v763 = vrcp.pop %v709
      %v764 = vmul.f32 1.0, %v763
      %v765 = vrcp.pop %v710
      %v766 = vmul.f32 1.0, %v765
      %v767 = vrcp.pop %v711
      %v768 = vmul.f32 1.0, %v767
      %v769 = vrcp.pop %v712
      %v770 = vmul.f32 1.0, %v769
      %v771 = vrcp.pop %v713
      %v772 = vmul.f32 1.0, %v771
      %v773 = vrcp.pop %v714
      %v774 = vmul.f32 1.0, %v773
      %v775 = vrcp.pop %v715
      %v776 = vmul.f32 1.0, %v775
      %v777 = vrcp.pop %v716
      %v778 = vmul.f32 1.0, %v777
      %v779 = vrcp.pop %v717
      %v780 = vmul.f32 1.0, %v779
      %v781 = vrcp.pop %v718
      %v782 = vmul.f32 1.0, %v781
      %784 = vset.pattern.permute.xlu0 0
      %785 = vperm.xlu0 %784, %v720
      %v786 = vpop.permute.xlu0 %785
      %789 = vset.pattern.permute.xlu0 0
      %790 = vperm.xlu0 %789, %v722
      %v791 = vpop.permute.xlu0 %790
      %794 = vset.pattern.permute.xlu0 0
      %795 = vperm.xlu0 %794, %v724
      %v796 = vpop.permute.xlu0 %795
      %799 = vset.pattern.permute.xlu0 0
      %800 = vperm.xlu0 %799, %v726
      %v801 = vpop.permute.xlu0 %800
      %804 = vset.pattern.permute.xlu0 0
      %805 = vperm.xlu0 %804, %v728
      %v806 = vpop.permute.xlu0 %805
      %809 = vset.pattern.permute.xlu0 0
      %810 = vperm.xlu0 %809, %v730
      %v811 = vpop.permute.xlu0 %810
      %814 = vset.pattern.permute.xlu0 0
      %815 = vperm.xlu0 %814, %v732
      %v816 = vpop.permute.xlu0 %815
      %819 = vset.pattern.permute.xlu0 0
      %820 = vperm.xlu0 %819, %v734
      %v821 = vpop.permute.xlu0 %820
      %824 = vset.pattern.permute.xlu0 0
      %825 = vperm.xlu0 %824, %v736
      %v826 = vpop.permute.xlu0 %825
      %829 = vset.pattern.permute.xlu0 0
      %830 = vperm.xlu0 %829, %v738
      %v831 = vpop.permute.xlu0 %830
      %834 = vset.pattern.permute.xlu0 0
      %835 = vperm.xlu0 %834, %v740
      %v836 = vpop.permute.xlu0 %835
      %839 = vset.pattern.permute.xlu0 0
      %840 = vperm.xlu0 %839, %v742
      %v841 = vpop.permute.xlu0 %840
      %844 = vset.pattern.permute.xlu0 0
      %845 = vperm.xlu0 %844, %v744
      %v846 = vpop.permute.xlu0 %845
      %849 = vset.pattern.permute.xlu0 0
      %850 = vperm.xlu0 %849, %v746
      %v851 = vpop.permute.xlu0 %850
      %854 = vset.pattern.permute.xlu0 0
      %855 = vperm.xlu0 %854, %v748
      %v856 = vpop.permute.xlu0 %855
      %859 = vset.pattern.permute.xlu0 0
      %860 = vperm.xlu0 %859, %v750
      %v861 = vpop.permute.xlu0 %860
      %864 = vset.pattern.permute.xlu0 0
      %865 = vperm.xlu0 %864, %v752
      %v866 = vpop.permute.xlu0 %865
      %869 = vset.pattern.permute.xlu0 0
      %870 = vperm.xlu0 %869, %v754
      %v871 = vpop.permute.xlu0 %870
      %874 = vset.pattern.permute.xlu0 0
      %875 = vperm.xlu0 %874, %v756
      %v876 = vpop.permute.xlu0 %875
      %879 = vset.pattern.permute.xlu0 0
      %880 = vperm.xlu0 %879, %v758
      %v881 = vpop.permute.xlu0 %880
      %884 = vset.pattern.permute.xlu0 0
      %885 = vperm.xlu0 %884, %v760
      %v886 = vpop.permute.xlu0 %885
      %889 = vset.pattern.permute.xlu0 0
      %890 = vperm.xlu0 %889, %v762
      %v891 = vpop.permute.xlu0 %890
      %894 = vset.pattern.permute.xlu0 0
      %895 = vperm.xlu0 %894, %v764
      %v896 = vpop.permute.xlu0 %895
      %899 = vset.pattern.permute.xlu0 0
      %900 = vperm.xlu0 %899, %v766
      %v901 = vpop.permute.xlu0 %900
      %904 = vset.pattern.permute.xlu0 0
      %905 = vperm.xlu0 %904, %v768
      %v906 = vpop.permute.xlu0 %905
      %909 = vset.pattern.permute.xlu0 0
      %910 = vperm.xlu0 %909, %v770
      %v911 = vpop.permute.xlu0 %910
      %914 = vset.pattern.permute.xlu0 0
      %915 = vperm.xlu0 %914, %v772
      %v916 = vpop.permute.xlu0 %915
      %919 = vset.pattern.permute.xlu0 0
      %920 = vperm.xlu0 %919, %v774
      %v921 = vpop.permute.xlu0 %920
      %924 = vset.pattern.permute.xlu0 0
      %925 = vperm.xlu0 %924, %v776
      %v926 = vpop.permute.xlu0 %925
      %929 = vset.pattern.permute.xlu0 0
      %930 = vperm.xlu0 %929, %v778
      %v931 = vpop.permute.xlu0 %930
      %934 = vset.pattern.permute.xlu0 0
      %935 = vperm.xlu0 %934, %v780
      %v936 = vpop.permute.xlu0 %935
      %939 = vset.pattern.permute.xlu0 0
      %940 = vperm.xlu0 %939, %v782
      %v941 = vpop.permute.xlu0 %940
      %v943 = vmul.f32 %v225, %v786
      %v944 = vmul.f32 %v226, %v791
      %v945 = vmul.f32 %v227, %v796
      %v946 = vmul.f32 %v228, %v801
      %v947 = vmul.f32 %v229, %v806
      %v948 = vmul.f32 %v230, %v811
      %v949 = vmul.f32 %v231, %v816
      %v950 = vmul.f32 %v232, %v821
      %v951 = vmul.f32 %v233, %v826
      %v952 = vmul.f32 %v234, %v831
      %v953 = vmul.f32 %v235, %v836
      %v954 = vmul.f32 %v236, %v841
      %v955 = vmul.f32 %v237, %v846
      %v956 = vmul.f32 %v238, %v851
      %v957 = vmul.f32 %v239, %v856
      %v958 = vmul.f32 %v240, %v861
      %v959 = vmul.f32 %v241, %v866
      %v960 = vmul.f32 %v242, %v871
      %v961 = vmul.f32 %v243, %v876
      %v962 = vmul.f32 %v244, %v881
      %v963 = vmul.f32 %v245, %v886
      %v964 = vmul.f32 %v246, %v891
      %v965 = vmul.f32 %v247, %v896
      %v966 = vmul.f32 %v248, %v901
      %v967 = vmul.f32 %v249, %v906
      %v968 = vmul.f32 %v250, %v911
      %v969 = vmul.f32 %v251, %v916
      %v970 = vmul.f32 %v252, %v921
      %v971 = vmul.f32 %v253, %v926
      %v972 = vmul.f32 %v254, %v931
      %v973 = vmul.f32 %v255, %v936
      %v974 = vmul.f32 %v256, %v941
      %975 = vset.pattern.permute.xlu0 1
      %976 = vperm.xlu0 %975, %v720
      %v977 = vpop.permute.xlu0 %976
      %979 = vset.pattern.permute.xlu0 1
      %980 = vperm.xlu0 %979, %v722
      %v981 = vpop.permute.xlu0 %980
      %983 = vset.pattern.permute.xlu0 1
      %984 = vperm.xlu0 %983, %v724
      %v985 = vpop.permute.xlu0 %984
      %987 = vset.pattern.permute.xlu0 1
      %988 = vperm.xlu0 %987, %v726
      %v989 = vpop.permute.xlu0 %988
      %991 = vset.pattern.permute.xlu0 1
      %992 = vperm.xlu0 %991, %v728
      %v993 = vpop.permute.xlu0 %992
      %995 = vset.pattern.permute.xlu0 1
      %996 = vperm.xlu0 %995, %v730
      %v997 = vpop.permute.xlu0 %996
      %999 = vset.pattern.permute.xlu0 1
      %1000 = vperm.xlu0 %999, %v732
      %v1001 = vpop.permute.xlu0 %1000
      %1003 = vset.pattern.permute.xlu0 1
      %1004 = vperm.xlu0 %1003, %v734
      %v1005 = vpop.permute.xlu0 %1004
      %1007 = vset.pattern.permute.xlu0 1
      %1008 = vperm.xlu0 %1007, %v736
      %v1009 = vpop.permute.xlu0 %1008
      %1011 = vset.pattern.permute.xlu0 1
      %1012 = vperm.xlu0 %1011, %v738
      %v1013 = vpop.permute.xlu0 %1012
      %1015 = vset.pattern.permute.xlu0 1
      %1016 = vperm.xlu0 %1015, %v740
      %v1017 = vpop.permute.xlu0 %1016
      %1019 = vset.pattern.permute.xlu0 1
      %1020 = vperm.xlu0 %1019, %v742
      %v1021 = vpop.permute.xlu0 %1020
      %1023 = vset.pattern.permute.xlu0 1
      %1024 = vperm.xlu0 %1023, %v744
      %v1025 = vpop.permute.xlu0 %1024
      %1027 = vset.pattern.permute.xlu0 1
      %1028 = vperm.xlu0 %1027, %v746
      %v1029 = vpop.permute.xlu0 %1028
      %1031 = vset.pattern.permute.xlu0 1
      %1032 = vperm.xlu0 %1031, %v748
      %v1033 = vpop.permute.xlu0 %1032
      %1035 = vset.pattern.permute.xlu0 1
      %1036 = vperm.xlu0 %1035, %v750
      %v1037 = vpop.permute.xlu0 %1036
      %1039 = vset.pattern.permute.xlu0 1
      %1040 = vperm.xlu0 %1039, %v752
      %v1041 = vpop.permute.xlu0 %1040
      %1043 = vset.pattern.permute.xlu0 1
      %1044 = vperm.xlu0 %1043, %v754
      %v1045 = vpop.permute.xlu0 %1044
      %1047 = vset.pattern.permute.xlu0 1
      %1048 = vperm.xlu0 %1047, %v756
      %v1049 = vpop.permute.xlu0 %1048
      %1051 = vset.pattern.permute.xlu0 1
      %1052 = vperm.xlu0 %1051, %v758
      %v1053 = vpop.permute.xlu0 %1052
      %1055 = vset.pattern.permute.xlu0 1
      %1056 = vperm.xlu0 %1055, %v760
      %v1057 = vpop.permute.xlu0 %1056
      %1059 = vset.pattern.permute.xlu0 1
      %1060 = vperm.xlu0 %1059, %v762
      %v1061 = vpop.permute.xlu0 %1060
      %1063 = vset.pattern.permute.xlu0 1
      %1064 = vperm.xlu0 %1063, %v764
      %v1065 = vpop.permute.xlu0 %1064
      %1067 = vset.pattern.permute.xlu0 1
      %1068 = vperm.xlu0 %1067, %v766
      %v1069 = vpop.permute.xlu0 %1068
      %1071 = vset.pattern.permute.xlu0 1
      %1072 = vperm.xlu0 %1071, %v768
      %v1073 = vpop.permute.xlu0 %1072
      %1075 = vset.pattern.permute.xlu0 1
      %1076 = vperm.xlu0 %1075, %v770
      %v1077 = vpop.permute.xlu0 %1076
      %1079 = vset.pattern.permute.xlu0 1
      %1080 = vperm.xlu0 %1079, %v772
      %v1081 = vpop.permute.xlu0 %1080
      %1083 = vset.pattern.permute.xlu0 1
      %1084 = vperm.xlu0 %1083, %v774
      %v1085 = vpop.permute.xlu0 %1084
      %1087 = vset.pattern.permute.xlu0 1
      %1088 = vperm.xlu0 %1087, %v776
      %v1089 = vpop.permute.xlu0 %1088
      %1091 = vset.pattern.permute.xlu0 1
      %1092 = vperm.xlu0 %1091, %v778
      %v1093 = vpop.permute.xlu0 %1092
      %1095 = vset.pattern.permute.xlu0 1
      %1096 = vperm.xlu0 %1095, %v780
      %v1097 = vpop.permute.xlu0 %1096
      %1099 = vset.pattern.permute.xlu0 1
      %1100 = vperm.xlu0 %1099, %v782
      %v1101 = vpop.permute.xlu0 %1100
      %v1103 = vmul.f32 %v225, %v977
      %v1104 = vmul.f32 %v226, %v981
      %v1105 = vmul.f32 %v227, %v985
      %v1106 = vmul.f32 %v228, %v989
      %v1107 = vmul.f32 %v229, %v993
      %v1108 = vmul.f32 %v230, %v997
      %v1109 = vmul.f32 %v231, %v1001
      %v1110 = vmul.f32 %v232, %v1005
      %v1111 = vmul.f32 %v233, %v1009
      %v1112 = vmul.f32 %v234, %v1013
      %v1113 = vmul.f32 %v235, %v1017
      %v1114 = vmul.f32 %v236, %v1021
      %v1115 = vmul.f32 %v237, %v1025
      %v1116 = vmul.f32 %v238, %v1029
      %v1117 = vmul.f32 %v239, %v1033
      %v1118 = vmul.f32 %v240, %v1037
      %v1119 = vmul.f32 %v241, %v1041
      %v1120 = vmul.f32 %v242, %v1045
      %v1121 = vmul.f32 %v243, %v1049
      %v1122 = vmul.f32 %v244, %v1053
      %v1123 = vmul.f32 %v245, %v1057
      %v1124 = vmul.f32 %v246, %v1061
      %v1125 = vmul.f32 %v247, %v1065
      %v1126 = vmul.f32 %v248, %v1069
      %v1127 = vmul.f32 %v249, %v1073
      %v1128 = vmul.f32 %v250, %v1077
      %v1129 = vmul.f32 %v251, %v1081
      %v1130 = vmul.f32 %v252, %v1085
      %v1131 = vmul.f32 %v253, %v1089
      %v1132 = vmul.f32 %v254, %v1093
      %v1133 = vmul.f32 %v255, %v1097
      %v1134 = vmul.f32 %v256, %v1101
      %1167 = vrot.lane.b32.xlu0 %v1103, 4
      %v1168 = vpop.permute.xlu0 %1167
      %1169 = vrot.lane.b32.xlu0 %v1104, 4
      %v1170 = vpop.permute.xlu0 %1169
      %1171 = vrot.lane.b32.xlu0 %v1105, 4
      %v1172 = vpop.permute.xlu0 %1171
      %1173 = vrot.lane.b32.xlu0 %v1106, 4
      %v1174 = vpop.permute.xlu0 %1173
      %1175 = vrot.lane.b32.xlu0 %v1107, 4
      %v1176 = vpop.permute.xlu0 %1175
      %1177 = vrot.lane.b32.xlu0 %v1108, 4
      %v1178 = vpop.permute.xlu0 %1177
      %1179 = vrot.lane.b32.xlu0 %v1109, 4
      %v1180 = vpop.permute.xlu0 %1179
      %1181 = vrot.lane.b32.xlu0 %v1110, 4
      %v1182 = vpop.permute.xlu0 %1181
      %1183 = vrot.lane.b32.xlu0 %v1111, 4
      %v1184 = vpop.permute.xlu0 %1183
      %1185 = vrot.lane.b32.xlu0 %v1112, 4
      %v1186 = vpop.permute.xlu0 %1185
      %1187 = vrot.lane.b32.xlu0 %v1113, 4
      %v1188 = vpop.permute.xlu0 %1187
      %1189 = vrot.lane.b32.xlu0 %v1114, 4
      %v1190 = vpop.permute.xlu0 %1189
      %1191 = vrot.lane.b32.xlu0 %v1115, 4
      %v1192 = vpop.permute.xlu0 %1191
      %1193 = vrot.lane.b32.xlu0 %v1116, 4
      %v1194 = vpop.permute.xlu0 %1193
      %1195 = vrot.lane.b32.xlu0 %v1117, 4
      %v1196 = vpop.permute.xlu0 %1195
      %1197 = vrot.lane.b32.xlu0 %v1118, 4
      %v1198 = vpop.permute.xlu0 %1197
      %1199 = vrot.lane.b32.xlu0 %v1119, 4
      %v1200 = vpop.permute.xlu0 %1199
      %1201 = vrot.lane.b32.xlu0 %v1120, 4
      %v1202 = vpop.permute.xlu0 %1201
      %1203 = vrot.lane.b32.xlu0 %v1121, 4
      %v1204 = vpop.permute.xlu0 %1203
      %1205 = vrot.lane.b32.xlu0 %v1122, 4
      %v1206 = vpop.permute.xlu0 %1205
      %1207 = vrot.lane.b32.xlu0 %v1123, 4
      %v1208 = vpop.permute.xlu0 %1207
      %1209 = vrot.lane.b32.xlu0 %v1124, 4
      %v1210 = vpop.permute.xlu0 %1209
      %1211 = vrot.lane.b32.xlu0 %v1125, 4
      %v1212 = vpop.permute.xlu0 %1211
      %1213 = vrot.lane.b32.xlu0 %v1126, 4
      %v1214 = vpop.permute.xlu0 %1213
      %1215 = vrot.lane.b32.xlu0 %v1127, 4
      %v1216 = vpop.permute.xlu0 %1215
      %1217 = vrot.lane.b32.xlu0 %v1128, 4
      %v1218 = vpop.permute.xlu0 %1217
      %1219 = vrot.lane.b32.xlu0 %v1129, 4
      %v1220 = vpop.permute.xlu0 %1219
      %1221 = vrot.lane.b32.xlu0 %v1130, 4
      %v1222 = vpop.permute.xlu0 %1221
      %1223 = vrot.lane.b32.xlu0 %v1131, 4
      %v1224 = vpop.permute.xlu0 %1223
      %1225 = vrot.lane.b32.xlu0 %v1132, 4
      %v1226 = vpop.permute.xlu0 %1225
      %1227 = vrot.lane.b32.xlu0 %v1133, 4
      %v1228 = vpop.permute.xlu0 %1227
      %1229 = vrot.lane.b32.xlu0 %v1134, 4
      %v1230 = vpop.permute.xlu0 %1229
      %v1263 = vsel %vm265, %v943, %v1168
      %v1264 = vsel %vm265, %v944, %v1170
      %v1265 = vsel %vm265, %v945, %v1172
      %v1266 = vsel %vm265, %v946, %v1174
      %v1267 = vsel %vm265, %v947, %v1176
      %v1268 = vsel %vm265, %v948, %v1178
      %v1269 = vsel %vm265, %v949, %v1180
      %v1270 = vsel %vm265, %v950, %v1182
      %v1271 = vsel %vm265, %v951, %v1184
      %v1272 = vsel %vm265, %v952, %v1186
      %v1273 = vsel %vm265, %v953, %v1188
      %v1274 = vsel %vm265, %v954, %v1190
      %v1275 = vsel %vm265, %v955, %v1192
      %v1276 = vsel %vm265, %v956, %v1194
      %v1277 = vsel %vm265, %v957, %v1196
      %v1278 = vsel %vm265, %v958, %v1198
      %v1279 = vsel %vm265, %v959, %v1200
      %v1280 = vsel %vm265, %v960, %v1202
      %v1281 = vsel %vm265, %v961, %v1204
      %v1282 = vsel %vm265, %v962, %v1206
      %v1283 = vsel %vm265, %v963, %v1208
      %v1284 = vsel %vm265, %v964, %v1210
      %v1285 = vsel %vm265, %v965, %v1212
      %v1286 = vsel %vm265, %v966, %v1214
      %v1287 = vsel %vm265, %v967, %v1216
      %v1288 = vsel %vm265, %v968, %v1218
      %v1289 = vsel %vm265, %v969, %v1220
      %v1290 = vsel %vm265, %v970, %v1222
      %v1291 = vsel %vm265, %v971, %v1224
      %v1292 = vsel %vm265, %v972, %v1226
      %v1293 = vsel %vm265, %v973, %v1228
      %v1294 = vsel %vm265, %v974, %v1230
      %vm1295 = vcmask 64512
      %1296 = vst.msk [vmem:[#allocation2] sm:$0xff] %vm1295, 0.0
      %1297 = vst.msk [vmem:[#allocation2 + $0x8] sm:$0xff] %vm1295, 0.0
      %vm1298 = vcmask 58368
      %1299 = vst.msk [vmem:[#allocation2 + $0x10] sm:$0x3] %vm1298, 0.0
      %s1300 = scalar_lea.vmem [#allocation2], 408
      %1301 = vst.msk [vmem:[%s1300] sm:$0xff] %vm1295, 0.0
      %1302 = vst.msk [vmem:[%s1300 + $0x8] sm:$0xff] %vm1295, 0.0
      %1303 = vst.msk [vmem:[%s1300 + $0x10] sm:$0x3] %vm1298, 0.0
      %vm1304 = vcmask 57344
      %1305 = vst.msk [vmem:[#allocation2] sm:$0x1] %vm1304, 0.0
      %1306 = vst.msk [vmem:[#allocation2 + $0x18] sm:$0x1] %vm1304, 0.0
      %1307 = vst.msk [vmem:[#allocation2 + $0x30] sm:$0x1] %vm1304, 0.0
      %1308 = vst.msk [vmem:[#allocation2 + $0x48] sm:$0x1] %vm1304, 0.0
      %1309 = vst.msk [vmem:[#allocation2 + $0x60] sm:$0x1] %vm1304, 0.0
      %1310 = vst.msk [vmem:[#allocation2 + $0x78] sm:$0x1] %vm1304, 0.0
      %1311 = vst.msk [vmem:[#allocation2 + $0x90] sm:$0x1] %vm1304, 0.0
      %1312 = vst.msk [vmem:[#allocation2 + $0xa8] sm:$0x1] %vm1304, 0.0
      %1313 = vst.msk [vmem:[#allocation2 + $0xc0] sm:$0x1] %vm1304, 0.0
      %1314 = vst.msk [vmem:[#allocation2 + $0xd8] sm:$0x1] %vm1304, 0.0
      %1315 = vst.msk [vmem:[#allocation2 + $0xf0] sm:$0x1] %vm1304, 0.0
      %1316 = vst.msk [vmem:[#allocation2 + $0x108] sm:$0x1] %vm1304, 0.0
      %1317 = vst.msk [vmem:[#allocation2 + $0x120] sm:$0x1] %vm1304, 0.0
      %1318 = vst.msk [vmem:[#allocation2 + $0x138] sm:$0x1] %vm1304, 0.0
      %1319 = vst.msk [vmem:[#allocation2 + $0x150] sm:$0x1] %vm1304, 0.0
      %1320 = vst.msk [vmem:[#allocation2 + $0x168] sm:$0x1] %vm1304, 0.0
      %1321 = vst.msk [vmem:[#allocation2 + $0x180] sm:$0x1] %vm1304, 0.0
      %1322 = vst.msk [vmem:[#allocation2 + $0x198] sm:$0x1] %vm1304, 0.0
      %1323 = vst.msk [vmem:[#allocation2 + $0x11] sm:$0x1] %vm1304, 0.0
      %1324 = vst.msk [vmem:[#allocation2 + $0x29] sm:$0x1] %vm1304, 0.0
      %1325 = vst.msk [vmem:[#allocation2 + $0x41] sm:$0x1] %vm1304, 0.0
      %1326 = vst.msk [vmem:[#allocation2 + $0x59] sm:$0x1] %vm1304, 0.0
      %1327 = vst.msk [vmem:[#allocation2 + $0x71] sm:$0x1] %vm1304, 0.0
      %1328 = vst.msk [vmem:[#allocation2 + $0x89] sm:$0x1] %vm1304, 0.0
      %1329 = vst.msk [vmem:[#allocation2 + $0xa1] sm:$0x1] %vm1304, 0.0
      %1330 = vst.msk [vmem:[#allocation2 + $0xb9] sm:$0x1] %vm1304, 0.0
      %1331 = vst.msk [vmem:[#allocation2 + $0xd1] sm:$0x1] %vm1304, 0.0
      %1332 = vst.msk [vmem:[#allocation2 + $0xe9] sm:$0x1] %vm1304, 0.0
      %1333 = vst.msk [vmem:[#allocation2 + $0x101] sm:$0x1] %vm1304, 0.0
      %1334 = vst.msk [vmem:[#allocation2 + $0x119] sm:$0x1] %vm1304, 0.0
      %1335 = vst.msk [vmem:[#allocation2 + $0x131] sm:$0x1] %vm1304, 0.0
      %1336 = vst.msk [vmem:[#allocation2 + $0x149] sm:$0x1] %vm1304, 0.0
      %1337 = vst.msk [vmem:[#allocation2 + $0x161] sm:$0x1] %vm1304, 0.0
      %1338 = vst.msk [vmem:[#allocation2 + $0x179] sm:$0x1] %vm1304, 0.0
      %1339 = vst.msk [vmem:[#allocation2 + $0x191] sm:$0x1] %vm1304, 0.0
      %1340 = vst.msk [vmem:[#allocation2 + $0x1a9] sm:$0x1] %vm1304, 0.0
      %s1341 = scalar_lea.vmem [#allocation2], 24
      %1342 = vst.msk [vmem:[%s1341 + $0x1] sm:$0xff] %vm1295, %v1263
      %1343 = vst.msk [vmem:[%s1341 + $0x9] sm:$0xff] %vm1295, %v1264
      %1344 = vst.msk [vmem:[%s1341 + $0x19] sm:$0xff] %vm1295, %v1265
      %1345 = vst.msk [vmem:[%s1341 + $0x21] sm:$0xff] %vm1295, %v1266
      %1346 = vst.msk [vmem:[%s1341 + $0x31] sm:$0xff] %vm1295, %v1267
      %1347 = vst.msk [vmem:[%s1341 + $0x39] sm:$0xff] %vm1295, %v1268
      %1348 = vst.msk [vmem:[%s1341 + $0x49] sm:$0xff] %vm1295, %v1269
      %1349 = vst.msk [vmem:[%s1341 + $0x51] sm:$0xff] %vm1295, %v1270
      %1350 = vst.msk [vmem:[%s1341 + $0x61] sm:$0xff] %vm1295, %v1271
      %1351 = vst.msk [vmem:[%s1341 + $0x69] sm:$0xff] %vm1295, %v1272
      %1352 = vst.msk [vmem:[%s1341 + $0x79] sm:$0xff] %vm1295, %v1273
      %1353 = vst.msk [vmem:[%s1341 + $0x81] sm:$0xff] %vm1295, %v1274
      %1354 = vst.msk [vmem:[%s1341 + $0x91] sm:$0xff] %vm1295, %v1275
      %1355 = vst.msk [vmem:[%s1341 + $0x99] sm:$0xff] %vm1295, %v1276
      %1356 = vst.msk [vmem:[%s1341 + $0xa9] sm:$0xff] %vm1295, %v1277
      %1357 = vst.msk [vmem:[%s1341 + $0xb1] sm:$0xff] %vm1295, %v1278
      %1358 = vst.msk [vmem:[%s1341 + $0xc1] sm:$0xff] %vm1295, %v1279
      %1359 = vst.msk [vmem:[%s1341 + $0xc9] sm:$0xff] %vm1295, %v1280
      %1360 = vst.msk [vmem:[%s1341 + $0xd9] sm:$0xff] %vm1295, %v1281
      %1361 = vst.msk [vmem:[%s1341 + $0xe1] sm:$0xff] %vm1295, %v1282
      %1362 = vst.msk [vmem:[%s1341 + $0xf1] sm:$0xff] %vm1295, %v1283
      %1363 = vst.msk [vmem:[%s1341 + $0xf9] sm:$0xff] %vm1295, %v1284
      %1364 = vst.msk [vmem:[%s1341 + $0x109] sm:$0xff] %vm1295, %v1285
      %1365 = vst.msk [vmem:[%s1341 + $0x111] sm:$0xff] %vm1295, %v1286
      %1366 = vst.msk [vmem:[%s1341 + $0x121] sm:$0xff] %vm1295, %v1287
      %1367 = vst.msk [vmem:[%s1341 + $0x129] sm:$0xff] %vm1295, %v1288
      %1368 = vst.msk [vmem:[%s1341 + $0x139] sm:$0xff] %vm1295, %v1289
      %1369 = vst.msk [vmem:[%s1341 + $0x141] sm:$0xff] %vm1295, %v1290
      %1370 = vst.msk [vmem:[%s1341 + $0x151] sm:$0xff] %vm1295, %v1291
      %1371 = vst.msk [vmem:[%s1341 + $0x159] sm:$0xff] %vm1295, %v1292
      %1372 = vst.msk [vmem:[%s1341 + $0x169] sm:$0xff] %vm1295, %v1293
      %1373 = vst.msk [vmem:[%s1341 + $0x171] sm:$0xff] %vm1295, %v1294
      %v1374 = vld [vmem:[#allocation2] sm:$0xff]
      %v1375 = vld [vmem:[#allocation2 + $0x8] sm:$0xff]
      %v1376 = vld [vmem:[#allocation2 + $0x18] sm:$0xff]
      %v1377 = vld [vmem:[#allocation2 + $0x20] sm:$0xff]
      %v1378 = vld [vmem:[#allocation2 + $0x30] sm:$0xff]
      %v1379 = vld [vmem:[#allocation2 + $0x38] sm:$0xff]
      %v1380 = vld [vmem:[#allocation2 + $0x48] sm:$0xff]
      %v1381 = vld [vmem:[#allocation2 + $0x50] sm:$0xff]
      %v1382 = vld [vmem:[#allocation2 + $0x60] sm:$0xff]
      %v1383 = vld [vmem:[#allocation2 + $0x68] sm:$0xff]
      %v1384 = vld [vmem:[#allocation2 + $0x78] sm:$0xff]
      %v1385 = vld [vmem:[#allocation2 + $0x80] sm:$0xff]
      %v1386 = vld [vmem:[#allocation2 + $0x90] sm:$0xff]
      %v1387 = vld [vmem:[#allocation2 + $0x98] sm:$0xff]
      %v1388 = vld [vmem:[#allocation2 + $0xa8] sm:$0xff]
      %v1389 = vld [vmem:[#allocation2 + $0xb0] sm:$0xff]
      %v1390 = vld [vmem:[#allocation2 + $0xc0] sm:$0xff]
      %v1391 = vld [vmem:[#allocation2 + $0xc8] sm:$0xff]
      %v1392 = vld [vmem:[#allocation2 + $0xd8] sm:$0xff]
      %v1393 = vld [vmem:[#allocation2 + $0xe0] sm:$0xff]
      %v1394 = vld [vmem:[#allocation2 + $0xf0] sm:$0xff]
      %v1395 = vld [vmem:[#allocation2 + $0xf8] sm:$0xff]
      %v1396 = vld [vmem:[#allocation2 + $0x108] sm:$0xff]
      %v1397 = vld [vmem:[#allocation2 + $0x110] sm:$0xff]
      %v1398 = vld [vmem:[#allocation2 + $0x120] sm:$0xff]
      %v1399 = vld [vmem:[#allocation2 + $0x128] sm:$0xff]
      %v1400 = vld [vmem:[#allocation2 + $0x138] sm:$0xff]
      %v1401 = vld [vmem:[#allocation2 + $0x140] sm:$0xff]
      %v1402 = vld [vmem:[#allocation2 + $0x150] sm:$0xff]
      %v1403 = vld [vmem:[#allocation2 + $0x158] sm:$0xff]
      %v1404 = vld [vmem:[#allocation2 + $0x168] sm:$0xff]
      %v1405 = vld [vmem:[#allocation2 + $0x170] sm:$0xff]
      %v1406 = vld [vmem:[#allocation2 + $0x1] sm:$0xff]
      %v1407 = vld [vmem:[#allocation2 + $0x9] sm:$0xff]
      %v1408 = vld [vmem:[#allocation2 + $0x19] sm:$0xff]
      %v1409 = vld [vmem:[#allocation2 + $0x21] sm:$0xff]
      %v1410 = vld [vmem:[#allocation2 + $0x31] sm:$0xff]
      %v1411 = vld [vmem:[#allocation2 + $0x39] sm:$0xff]
      %v1412 = vld [vmem:[#allocation2 + $0x49] sm:$0xff]
      %v1413 = vld [vmem:[#allocation2 + $0x51] sm:$0xff]
      %v1414 = vld [vmem:[#allocation2 + $0x61] sm:$0xff]
      %v1415 = vld [vmem:[#allocation2 + $0x69] sm:$0xff]
      %v1416 = vld [vmem:[#allocation2 + $0x79] sm:$0xff]
      %v1417 = vld [vmem:[#allocation2 + $0x81] sm:$0xff]
      %v1418 = vld [vmem:[#allocation2 + $0x91] sm:$0xff]
      %v1419 = vld [vmem:[#allocation2 + $0x99] sm:$0xff]
      %v1420 = vld [vmem:[#allocation2 + $0xa9] sm:$0xff]
      %v1421 = vld [vmem:[#allocation2 + $0xb1] sm:$0xff]
      %v1422 = vld [vmem:[#allocation2 + $0xc1] sm:$0xff]
      %v1423 = vld [vmem:[#allocation2 + $0xc9] sm:$0xff]
      %v1424 = vld [vmem:[#allocation2 + $0xd9] sm:$0xff]
      %v1425 = vld [vmem:[#allocation2 + $0xe1] sm:$0xff]
      %v1426 = vld [vmem:[#allocation2 + $0xf1] sm:$0xff]
      %v1427 = vld [vmem:[#allocation2 + $0xf9] sm:$0xff]
      %v1428 = vld [vmem:[#allocation2 + $0x109] sm:$0xff]
      %v1429 = vld [vmem:[#allocation2 + $0x111] sm:$0xff]
      %v1430 = vld [vmem:[#allocation2 + $0x121] sm:$0xff]
      %v1431 = vld [vmem:[#allocation2 + $0x129] sm:$0xff]
      %v1432 = vld [vmem:[#allocation2 + $0x139] sm:$0xff]
      %v1433 = vld [vmem:[#allocation2 + $0x141] sm:$0xff]
      %v1434 = vld [vmem:[#allocation2 + $0x151] sm:$0xff]
      %v1435 = vld [vmem:[#allocation2 + $0x159] sm:$0xff]
      %v1436 = vld [vmem:[#allocation2 + $0x169] sm:$0xff]
      %v1437 = vld [vmem:[#allocation2 + $0x171] sm:$0xff]
      %v1438 = vld [vmem:[#allocation2 + $0x2] sm:$0xff]
      %v1439 = vld [vmem:[#allocation2 + $0xa] sm:$0xff]
      %v1440 = vld [vmem:[#allocation2 + $0x1a] sm:$0xff]
      %v1441 = vld [vmem:[#allocation2 + $0x22] sm:$0xff]
      %v1442 = vld [vmem:[#allocation2 + $0x32] sm:$0xff]
      %v1443 = vld [vmem:[#allocation2 + $0x3a] sm:$0xff]
      %v1444 = vld [vmem:[#allocation2 + $0x4a] sm:$0xff]
      %v1445 = vld [vmem:[#allocation2 + $0x52] sm:$0xff]
      %v1446 = vld [vmem:[#allocation2 + $0x62] sm:$0xff]
      %v1447 = vld [vmem:[#allocation2 + $0x6a] sm:$0xff]
      %v1448 = vld [vmem:[#allocation2 + $0x7a] sm:$0xff]
      %v1449 = vld [vmem:[#allocation2 + $0x82] sm:$0xff]
      %v1450 = vld [vmem:[#allocation2 + $0x92] sm:$0xff]
      %v1451 = vld [vmem:[#allocation2 + $0x9a] sm:$0xff]
      %v1452 = vld [vmem:[#allocation2 + $0xaa] sm:$0xff]
      %v1453 = vld [vmem:[#allocation2 + $0xb2] sm:$0xff]
      %v1454 = vld [vmem:[#allocation2 + $0xc2] sm:$0xff]
      %v1455 = vld [vmem:[#allocation2 + $0xca] sm:$0xff]
      %v1456 = vld [vmem:[#allocation2 + $0xda] sm:$0xff]
      %v1457 = vld [vmem:[#allocation2 + $0xe2] sm:$0xff]
      %v1458 = vld [vmem:[#allocation2 + $0xf2] sm:$0xff]
      %v1459 = vld [vmem:[#allocation2 + $0xfa] sm:$0xff]
      %v1460 = vld [vmem:[#allocation2 + $0x10a] sm:$0xff]
      %v1461 = vld [vmem:[#allocation2 + $0x112] sm:$0xff]
      %v1462 = vld [vmem:[#allocation2 + $0x122] sm:$0xff]
      %v1463 = vld [vmem:[#allocation2 + $0x12a] sm:$0xff]
      %v1464 = vld [vmem:[#allocation2 + $0x13a] sm:$0xff]
      %v1465 = vld [vmem:[#allocation2 + $0x142] sm:$0xff]
      %v1466 = vld [vmem:[#allocation2 + $0x152] sm:$0xff]
      %v1467 = vld [vmem:[#allocation2 + $0x15a] sm:$0xff]
      %v1468 = vld [vmem:[#allocation2 + $0x16a] sm:$0xff]
      %v1469 = vld [vmem:[#allocation2 + $0x172] sm:$0xff]
      %v1470 = vld [vmem:[%s1341] sm:$0xff]
      %v1471 = vld [vmem:[%s1341 + $0x8] sm:$0xff]
      %v1472 = vld [vmem:[%s1341 + $0x18] sm:$0xff]
      %v1473 = vld [vmem:[%s1341 + $0x20] sm:$0xff]
      %v1474 = vld [vmem:[%s1341 + $0x30] sm:$0xff]
      %v1475 = vld [vmem:[%s1341 + $0x38] sm:$0xff]
      %v1476 = vld [vmem:[%s1341 + $0x48] sm:$0xff]
      %v1477 = vld [vmem:[%s1341 + $0x50] sm:$0xff]
      %v1478 = vld [vmem:[%s1341 + $0x60] sm:$0xff]
      %v1479 = vld [vmem:[%s1341 + $0x68] sm:$0xff]
      %v1480 = vld [vmem:[%s1341 + $0x78] sm:$0xff]
      %v1481 = vld [vmem:[%s1341 + $0x80] sm:$0xff]
      %v1482 = vld [vmem:[%s1341 + $0x90] sm:$0xff]
      %v1483 = vld [vmem:[%s1341 + $0x98] sm:$0xff]
      %v1484 = vld [vmem:[%s1341 + $0xa8] sm:$0xff]
      %v1485 = vld [vmem:[%s1341 + $0xb0] sm:$0xff]
      %v1486 = vld [vmem:[%s1341 + $0xc0] sm:$0xff]
      %v1487 = vld [vmem:[%s1341 + $0xc8] sm:$0xff]
      %v1488 = vld [vmem:[%s1341 + $0xd8] sm:$0xff]
      %v1489 = vld [vmem:[%s1341 + $0xe0] sm:$0xff]
      %v1490 = vld [vmem:[%s1341 + $0xf0] sm:$0xff]
      %v1491 = vld [vmem:[%s1341 + $0xf8] sm:$0xff]
      %v1492 = vld [vmem:[%s1341 + $0x108] sm:$0xff]
      %v1493 = vld [vmem:[%s1341 + $0x110] sm:$0xff]
      %v1494 = vld [vmem:[%s1341 + $0x120] sm:$0xff]
      %v1495 = vld [vmem:[%s1341 + $0x128] sm:$0xff]
      %v1496 = vld [vmem:[%s1341 + $0x138] sm:$0xff]
      %v1497 = vld [vmem:[%s1341 + $0x140] sm:$0xff]
      %v1498 = vld [vmem:[%s1341 + $0x150] sm:$0xff]
      %v1499 = vld [vmem:[%s1341 + $0x158] sm:$0xff]
      %v1500 = vld [vmem:[%s1341 + $0x168] sm:$0xff]
      %v1501 = vld [vmem:[%s1341 + $0x170] sm:$0xff]
      %v1502 = vld [vmem:[%s1341 + $0x1] sm:$0xff]
      %v1503 = vld [vmem:[%s1341 + $0x9] sm:$0xff]
      %v1504 = vld [vmem:[%s1341 + $0x19] sm:$0xff]
      %v1505 = vld [vmem:[%s1341 + $0x21] sm:$0xff]
      %v1506 = vld [vmem:[%s1341 + $0x31] sm:$0xff]
      %v1507 = vld [vmem:[%s1341 + $0x39] sm:$0xff]
      %v1508 = vld [vmem:[%s1341 + $0x49] sm:$0xff]
      %v1509 = vld [vmem:[%s1341 + $0x51] sm:$0xff]
      %v1510 = vld [vmem:[%s1341 + $0x61] sm:$0xff]
      %v1511 = vld [vmem:[%s1341 + $0x69] sm:$0xff]
      %v1512 = vld [vmem:[%s1341 + $0x79] sm:$0xff]
      %v1513 = vld [vmem:[%s1341 + $0x81] sm:$0xff]
      %v1514 = vld [vmem:[%s1341 + $0x91] sm:$0xff]
      %v1515 = vld [vmem:[%s1341 + $0x99] sm:$0xff]
      %v1516 = vld [vmem:[%s1341 + $0xa9] sm:$0xff]
      %v1517 = vld [vmem:[%s1341 + $0xb1] sm:$0xff]
      %v1518 = vld [vmem:[%s1341 + $0xc1] sm:$0xff]
      %v1519 = vld [vmem:[%s1341 + $0xc9] sm:$0xff]
      %v1520 = vld [vmem:[%s1341 + $0xd9] sm:$0xff]
      %v1521 = vld [vmem:[%s1341 + $0xe1] sm:$0xff]
      %v1522 = vld [vmem:[%s1341 + $0xf1] sm:$0xff]
      %v1523 = vld [vmem:[%s1341 + $0xf9] sm:$0xff]
      %v1524 = vld [vmem:[%s1341 + $0x109] sm:$0xff]
      %v1525 = vld [vmem:[%s1341 + $0x111] sm:$0xff]
      %v1526 = vld [vmem:[%s1341 + $0x121] sm:$0xff]
      %v1527 = vld [vmem:[%s1341 + $0x129] sm:$0xff]
      %v1528 = vld [vmem:[%s1341 + $0x139] sm:$0xff]
      %v1529 = vld [vmem:[%s1341 + $0x141] sm:$0xff]
      %v1530 = vld [vmem:[%s1341 + $0x151] sm:$0xff]
      %v1531 = vld [vmem:[%s1341 + $0x159] sm:$0xff]
      %v1532 = vld [vmem:[%s1341 + $0x169] sm:$0xff]
      %v1533 = vld [vmem:[%s1341 + $0x171] sm:$0xff]
      %v1534 = vld [vmem:[%s1341 + $0x2] sm:$0xff]
      %v1535 = vld [vmem:[%s1341 + $0xa] sm:$0xff]
      %v1536 = vld [vmem:[%s1341 + $0x1a] sm:$0xff]
      %v1537 = vld [vmem:[%s1341 + $0x22] sm:$0xff]
      %v1538 = vld [vmem:[%s1341 + $0x32] sm:$0xff]
      %v1539 = vld [vmem:[%s1341 + $0x3a] sm:$0xff]
      %v1540 = vld [vmem:[%s1341 + $0x4a] sm:$0xff]
      %v1541 = vld [vmem:[%s1341 + $0x52] sm:$0xff]
      %v1542 = vld [vmem:[%s1341 + $0x62] sm:$0xff]
      %v1543 = vld [vmem:[%s1341 + $0x6a] sm:$0xff]
      %v1544 = vld [vmem:[%s1341 + $0x7a] sm:$0xff]
      %v1545 = vld [vmem:[%s1341 + $0x82] sm:$0xff]
      %v1546 = vld [vmem:[%s1341 + $0x92] sm:$0xff]
      %v1547 = vld [vmem:[%s1341 + $0x9a] sm:$0xff]
      %v1548 = vld [vmem:[%s1341 + $0xaa] sm:$0xff]
      %v1549 = vld [vmem:[%s1341 + $0xb2] sm:$0xff]
      %v1550 = vld [vmem:[%s1341 + $0xc2] sm:$0xff]
      %v1551 = vld [vmem:[%s1341 + $0xca] sm:$0xff]
      %v1552 = vld [vmem:[%s1341 + $0xda] sm:$0xff]
      %v1553 = vld [vmem:[%s1341 + $0xe2] sm:$0xff]
      %v1554 = vld [vmem:[%s1341 + $0xf2] sm:$0xff]
      %v1555 = vld [vmem:[%s1341 + $0xfa] sm:$0xff]
      %v1556 = vld [vmem:[%s1341 + $0x10a] sm:$0xff]
      %v1557 = vld [vmem:[%s1341 + $0x112] sm:$0xff]
      %v1558 = vld [vmem:[%s1341 + $0x122] sm:$0xff]
      %v1559 = vld [vmem:[%s1341 + $0x12a] sm:$0xff]
      %v1560 = vld [vmem:[%s1341 + $0x13a] sm:$0xff]
      %v1561 = vld [vmem:[%s1341 + $0x142] sm:$0xff]
      %v1562 = vld [vmem:[%s1341 + $0x152] sm:$0xff]
      %v1563 = vld [vmem:[%s1341 + $0x15a] sm:$0xff]
      %v1564 = vld [vmem:[%s1341 + $0x16a] sm:$0xff]
      %v1565 = vld [vmem:[%s1341 + $0x172] sm:$0xff]
      %s1566 = scalar_lea.vmem [#allocation2], 48
      %v1567 = vld [vmem:[%s1566] sm:$0xff]
      %v1568 = vld [vmem:[%s1566 + $0x8] sm:$0xff]
      %v1569 = vld [vmem:[%s1566 + $0x18] sm:$0xff]
      %v1570 = vld [vmem:[%s1566 + $0x20] sm:$0xff]
      %v1571 = vld [vmem:[%s1566 + $0x30] sm:$0xff]
      %v1572 = vld [vmem:[%s1566 + $0x38] sm:$0xff]
      %v1573 = vld [vmem:[%s1566 + $0x48] sm:$0xff]
      %v1574 = vld [vmem:[%s1566 + $0x50] sm:$0xff]
      %v1575 = vld [vmem:[%s1566 + $0x60] sm:$0xff]
      %v1576 = vld [vmem:[%s1566 + $0x68] sm:$0xff]
      %v1577 = vld [vmem:[%s1566 + $0x78] sm:$0xff]
      %v1578 = vld [vmem:[%s1566 + $0x80] sm:$0xff]
      %v1579 = vld [vmem:[%s1566 + $0x90] sm:$0xff]
      %v1580 = vld [vmem:[%s1566 + $0x98] sm:$0xff]
      %v1581 = vld [vmem:[%s1566 + $0xa8] sm:$0xff]
      %v1582 = vld [vmem:[%s1566 + $0xb0] sm:$0xff]
      %v1583 = vld [vmem:[%s1566 + $0xc0] sm:$0xff]
      %v1584 = vld [vmem:[%s1566 + $0xc8] sm:$0xff]
      %v1585 = vld [vmem:[%s1566 + $0xd8] sm:$0xff]
      %v1586 = vld [vmem:[%s1566 + $0xe0] sm:$0xff]
      %v1587 = vld [vmem:[%s1566 + $0xf0] sm:$0xff]
      %v1588 = vld [vmem:[%s1566 + $0xf8] sm:$0xff]
      %v1589 = vld [vmem:[%s1566 + $0x108] sm:$0xff]
      %v1590 = vld [vmem:[%s1566 + $0x110] sm:$0xff]
      %v1591 = vld [vmem:[%s1566 + $0x120] sm:$0xff]
      %v1592 = vld [vmem:[%s1566 + $0x128] sm:$0xff]
      %v1593 = vld [vmem:[%s1566 + $0x138] sm:$0xff]
      %v1594 = vld [vmem:[%s1566 + $0x140] sm:$0xff]
      %v1595 = vld [vmem:[%s1566 + $0x150] sm:$0xff]
      %v1596 = vld [vmem:[%s1566 + $0x158] sm:$0xff]
      %v1597 = vld [vmem:[%s1566 + $0x168] sm:$0xff]
      %v1598 = vld [vmem:[%s1566 + $0x170] sm:$0xff]
      %v1599 = vld [vmem:[%s1566 + $0x1] sm:$0xff]
      %v1600 = vld [vmem:[%s1566 + $0x9] sm:$0xff]
      %v1601 = vld [vmem:[%s1566 + $0x19] sm:$0xff]
      %v1602 = vld [vmem:[%s1566 + $0x21] sm:$0xff]
      %v1603 = vld [vmem:[%s1566 + $0x31] sm:$0xff]
      %v1604 = vld [vmem:[%s1566 + $0x39] sm:$0xff]
      %v1605 = vld [vmem:[%s1566 + $0x49] sm:$0xff]
      %v1606 = vld [vmem:[%s1566 + $0x51] sm:$0xff]
      %v1607 = vld [vmem:[%s1566 + $0x61] sm:$0xff]
      %v1608 = vld [vmem:[%s1566 + $0x69] sm:$0xff]
      %v1609 = vld [vmem:[%s1566 + $0x79] sm:$0xff]
      %v1610 = vld [vmem:[%s1566 + $0x81] sm:$0xff]
      %v1611 = vld [vmem:[%s1566 + $0x91] sm:$0xff]
      %v1612 = vld [vmem:[%s1566 + $0x99] sm:$0xff]
      %v1613 = vld [vmem:[%s1566 + $0xa9] sm:$0xff]
      %v1614 = vld [vmem:[%s1566 + $0xb1] sm:$0xff]
      %v1615 = vld [vmem:[%s1566 + $0xc1] sm:$0xff]
      %v1616 = vld [vmem:[%s1566 + $0xc9] sm:$0xff]
      %v1617 = vld [vmem:[%s1566 + $0xd9] sm:$0xff]
      %v1618 = vld [vmem:[%s1566 + $0xe1] sm:$0xff]
      %v1619 = vld [vmem:[%s1566 + $0xf1] sm:$0xff]
      %v1620 = vld [vmem:[%s1566 + $0xf9] sm:$0xff]
      %v1621 = vld [vmem:[%s1566 + $0x109] sm:$0xff]
      %v1622 = vld [vmem:[%s1566 + $0x111] sm:$0xff]
      %v1623 = vld [vmem:[%s1566 + $0x121] sm:$0xff]
      %v1624 = vld [vmem:[%s1566 + $0x129] sm:$0xff]
      %v1625 = vld [vmem:[%s1566 + $0x139] sm:$0xff]
      %v1626 = vld [vmem:[%s1566 + $0x141] sm:$0xff]
      %v1627 = vld [vmem:[%s1566 + $0x151] sm:$0xff]
      %v1628 = vld [vmem:[%s1566 + $0x159] sm:$0xff]
      %v1629 = vld [vmem:[%s1566 + $0x169] sm:$0xff]
      %v1630 = vld [vmem:[%s1566 + $0x171] sm:$0xff]
      %v1631 = vld [vmem:[%s1566 + $0x2] sm:$0xff]
      %v1632 = vld [vmem:[%s1566 + $0xa] sm:$0xff]
      %v1633 = vld [vmem:[%s1566 + $0x1a] sm:$0xff]
      %v1634 = vld [vmem:[%s1566 + $0x22] sm:$0xff]
      %v1635 = vld [vmem:[%s1566 + $0x32] sm:$0xff]
      %v1636 = vld [vmem:[%s1566 + $0x3a] sm:$0xff]
      %v1637 = vld [vmem:[%s1566 + $0x4a] sm:$0xff]
      %v1638 = vld [vmem:[%s1566 + $0x52] sm:$0xff]
      %v1639 = vld [vmem:[%s1566 + $0x62] sm:$0xff]
      %v1640 = vld [vmem:[%s1566 + $0x6a] sm:$0xff]
      %v1641 = vld [vmem:[%s1566 + $0x7a] sm:$0xff]
      %v1642 = vld [vmem:[%s1566 + $0x82] sm:$0xff]
      %v1643 = vld [vmem:[%s1566 + $0x92] sm:$0xff]
      %v1644 = vld [vmem:[%s1566 + $0x9a] sm:$0xff]
      %v1645 = vld [vmem:[%s1566 + $0xaa] sm:$0xff]
      %v1646 = vld [vmem:[%s1566 + $0xb2] sm:$0xff]
      %v1647 = vld [vmem:[%s1566 + $0xc2] sm:$0xff]
      %v1648 = vld [vmem:[%s1566 + $0xca] sm:$0xff]
      %v1649 = vld [vmem:[%s1566 + $0xda] sm:$0xff]
      %v1650 = vld [vmem:[%s1566 + $0xe2] sm:$0xff]
      %v1651 = vld [vmem:[%s1566 + $0xf2] sm:$0xff]
      %v1652 = vld [vmem:[%s1566 + $0xfa] sm:$0xff]
      %v1653 = vld [vmem:[%s1566 + $0x10a] sm:$0xff]
      %v1654 = vld [vmem:[%s1566 + $0x112] sm:$0xff]
      %v1655 = vld [vmem:[%s1566 + $0x122] sm:$0xff]
      %v1656 = vld [vmem:[%s1566 + $0x12a] sm:$0xff]
      %v1657 = vld [vmem:[%s1566 + $0x13a] sm:$0xff]
      %v1658 = vld [vmem:[%s1566 + $0x142] sm:$0xff]
      %v1659 = vld [vmem:[%s1566 + $0x152] sm:$0xff]
      %v1660 = vld [vmem:[%s1566 + $0x15a] sm:$0xff]
      %v1661 = vld [vmem:[%s1566 + $0x16a] sm:$0xff]
      %v1662 = vld [vmem:[%s1566 + $0x172] sm:$0xff]
      %1695 = vrot.lane.b32.xlu0 %v1406, 8
      %v1696 = vpop.permute.xlu0 %1695
      %1697 = vrot.lane.b32.xlu0 %v1407, 8
      %v1698 = vpop.permute.xlu0 %1697
      %1699 = vrot.lane.b32.xlu0 %v1408, 8
      %v1700 = vpop.permute.xlu0 %1699
      %1701 = vrot.lane.b32.xlu0 %v1409, 8
      %v1702 = vpop.permute.xlu0 %1701
      %1703 = vrot.lane.b32.xlu0 %v1410, 8
      %v1704 = vpop.permute.xlu0 %1703
      %1705 = vrot.lane.b32.xlu0 %v1411, 8
      %v1706 = vpop.permute.xlu0 %1705
      %1707 = vrot.lane.b32.xlu0 %v1412, 8
      %v1708 = vpop.permute.xlu0 %1707
      %1709 = vrot.lane.b32.xlu0 %v1413, 8
      %v1710 = vpop.permute.xlu0 %1709
      %1711 = vrot.lane.b32.xlu0 %v1414, 8
      %v1712 = vpop.permute.xlu0 %1711
      %1713 = vrot.lane.b32.xlu0 %v1415, 8
      %v1714 = vpop.permute.xlu0 %1713
      %1715 = vrot.lane.b32.xlu0 %v1416, 8
      %v1716 = vpop.permute.xlu0 %1715
      %1717 = vrot.lane.b32.xlu0 %v1417, 8
      %v1718 = vpop.permute.xlu0 %1717
      %1719 = vrot.lane.b32.xlu0 %v1418, 8
      %v1720 = vpop.permute.xlu0 %1719
      %1721 = vrot.lane.b32.xlu0 %v1419, 8
      %v1722 = vpop.permute.xlu0 %1721
      %1723 = vrot.lane.b32.xlu0 %v1420, 8
      %v1724 = vpop.permute.xlu0 %1723
      %1725 = vrot.lane.b32.xlu0 %v1421, 8
      %v1726 = vpop.permute.xlu0 %1725
      %1727 = vrot.lane.b32.xlu0 %v1422, 8
      %v1728 = vpop.permute.xlu0 %1727
      %1729 = vrot.lane.b32.xlu0 %v1423, 8
      %v1730 = vpop.permute.xlu0 %1729
      %1731 = vrot.lane.b32.xlu0 %v1424, 8
      %v1732 = vpop.permute.xlu0 %1731
      %1733 = vrot.lane.b32.xlu0 %v1425, 8
      %v1734 = vpop.permute.xlu0 %1733
      %1735 = vrot.lane.b32.xlu0 %v1426, 8
      %v1736 = vpop.permute.xlu0 %1735
      %1737 = vrot.lane.b32.xlu0 %v1427, 8
      %v1738 = vpop.permute.xlu0 %1737
      %1739 = vrot.lane.b32.xlu0 %v1428, 8
      %v1740 = vpop.permute.xlu0 %1739
      %1741 = vrot.lane.b32.xlu0 %v1429, 8
      %v1742 = vpop.permute.xlu0 %1741
      %1743 = vrot.lane.b32.xlu0 %v1430, 8
      %v1744 = vpop.permute.xlu0 %1743
      %1745 = vrot.lane.b32.xlu0 %v1431, 8
      %v1746 = vpop.permute.xlu0 %1745
      %1747 = vrot.lane.b32.xlu0 %v1432, 8
      %v1748 = vpop.permute.xlu0 %1747
      %1749 = vrot.lane.b32.xlu0 %v1433, 8
      %v1750 = vpop.permute.xlu0 %1749
      %1751 = vrot.lane.b32.xlu0 %v1434, 8
      %v1752 = vpop.permute.xlu0 %1751
      %1753 = vrot.lane.b32.xlu0 %v1435, 8
      %v1754 = vpop.permute.xlu0 %1753
      %1755 = vrot.lane.b32.xlu0 %v1436, 8
      %v1756 = vpop.permute.xlu0 %1755
      %1757 = vrot.lane.b32.xlu0 %v1437, 8
      %v1758 = vpop.permute.xlu0 %1757
      %1823 = vrot.lane.b32.xlu0 %v1438, 16
      %v1824 = vpop.permute.xlu0 %1823
      %1825 = vrot.lane.b32.xlu0 %v1439, 16
      %v1826 = vpop.permute.xlu0 %1825
      %1827 = vrot.lane.b32.xlu0 %v1440, 16
      %v1828 = vpop.permute.xlu0 %1827
      %1829 = vrot.lane.b32.xlu0 %v1441, 16
      %v1830 = vpop.permute.xlu0 %1829
      %1831 = vrot.lane.b32.xlu0 %v1442, 16
      %v1832 = vpop.permute.xlu0 %1831
      %1833 = vrot.lane.b32.xlu0 %v1443, 16
      %v1834 = vpop.permute.xlu0 %1833
      %1835 = vrot.lane.b32.xlu0 %v1444, 16
      %v1836 = vpop.permute.xlu0 %1835
      %1837 = vrot.lane.b32.xlu0 %v1445, 16
      %v1838 = vpop.permute.xlu0 %1837
      %1839 = vrot.lane.b32.xlu0 %v1446, 16
      %v1840 = vpop.permute.xlu0 %1839
      %1841 = vrot.lane.b32.xlu0 %v1447, 16
      %v1842 = vpop.permute.xlu0 %1841
      %1843 = vrot.lane.b32.xlu0 %v1448, 16
      %v1844 = vpop.permute.xlu0 %1843
      %1845 = vrot.lane.b32.xlu0 %v1449, 16
      %v1846 = vpop.permute.xlu0 %1845
      %1847 = vrot.lane.b32.xlu0 %v1450, 16
      %v1848 = vpop.permute.xlu0 %1847
      %1849 = vrot.lane.b32.xlu0 %v1451, 16
      %v1850 = vpop.permute.xlu0 %1849
      %1851 = vrot.lane.b32.xlu0 %v1452, 16
      %v1852 = vpop.permute.xlu0 %1851
      %1853 = vrot.lane.b32.xlu0 %v1453, 16
      %v1854 = vpop.permute.xlu0 %1853
      %1855 = vrot.lane.b32.xlu0 %v1454, 16
      %v1856 = vpop.permute.xlu0 %1855
      %1857 = vrot.lane.b32.xlu0 %v1455, 16
      %v1858 = vpop.permute.xlu0 %1857
      %1859 = vrot.lane.b32.xlu0 %v1456, 16
      %v1860 = vpop.permute.xlu0 %1859
      %1861 = vrot.lane.b32.xlu0 %v1457, 16
      %v1862 = vpop.permute.xlu0 %1861
      %1863 = vrot.lane.b32.xlu0 %v1458, 16
      %v1864 = vpop.permute.xlu0 %1863
      %1865 = vrot.lane.b32.xlu0 %v1459, 16
      %v1866 = vpop.permute.xlu0 %1865
      %1867 = vrot.lane.b32.xlu0 %v1460, 16
      %v1868 = vpop.permute.xlu0 %1867
      %1869 = vrot.lane.b32.xlu0 %v1461, 16
      %v1870 = vpop.permute.xlu0 %1869
      %1871 = vrot.lane.b32.xlu0 %v1462, 16
      %v1872 = vpop.permute.xlu0 %1871
      %1873 = vrot.lane.b32.xlu0 %v1463, 16
      %v1874 = vpop.permute.xlu0 %1873
      %1875 = vrot.lane.b32.xlu0 %v1464, 16
      %v1876 = vpop.permute.xlu0 %1875
      %1877 = vrot.lane.b32.xlu0 %v1465, 16
      %v1878 = vpop.permute.xlu0 %1877
      %1879 = vrot.lane.b32.xlu0 %v1466, 16
      %v1880 = vpop.permute.xlu0 %1879
      %1881 = vrot.lane.b32.xlu0 %v1467, 16
      %v1882 = vpop.permute.xlu0 %1881
      %1883 = vrot.lane.b32.xlu0 %v1468, 16
      %v1884 = vpop.permute.xlu0 %1883
      %1885 = vrot.lane.b32.xlu0 %v1469, 16
      %v1886 = vpop.permute.xlu0 %1885
      %1951 = vrot.lane.b32.xlu0 %v1470, 24
      %v1952 = vpop.permute.xlu0 %1951
      %1953 = vrot.lane.b32.xlu0 %v1471, 24
      %v1954 = vpop.permute.xlu0 %1953
      %1955 = vrot.lane.b32.xlu0 %v1472, 24
      %v1956 = vpop.permute.xlu0 %1955
      %1957 = vrot.lane.b32.xlu0 %v1473, 24
      %v1958 = vpop.permute.xlu0 %1957
      %1959 = vrot.lane.b32.xlu0 %v1474, 24
      %v1960 = vpop.permute.xlu0 %1959
      %1961 = vrot.lane.b32.xlu0 %v1475, 24
      %v1962 = vpop.permute.xlu0 %1961
      %1963 = vrot.lane.b32.xlu0 %v1476, 24
      %v1964 = vpop.permute.xlu0 %1963
      %1965 = vrot.lane.b32.xlu0 %v1477, 24
      %v1966 = vpop.permute.xlu0 %1965
      %1967 = vrot.lane.b32.xlu0 %v1478, 24
      %v1968 = vpop.permute.xlu0 %1967
      %1969 = vrot.lane.b32.xlu0 %v1479, 24
      %v1970 = vpop.permute.xlu0 %1969
      %1971 = vrot.lane.b32.xlu0 %v1480, 24
      %v1972 = vpop.permute.xlu0 %1971
      %1973 = vrot.lane.b32.xlu0 %v1481, 24
      %v1974 = vpop.permute.xlu0 %1973
      %1975 = vrot.lane.b32.xlu0 %v1482, 24
      %v1976 = vpop.permute.xlu0 %1975
      %1977 = vrot.lane.b32.xlu0 %v1483, 24
      %v1978 = vpop.permute.xlu0 %1977
      %1979 = vrot.lane.b32.xlu0 %v1484, 24
      %v1980 = vpop.permute.xlu0 %1979
      %1981 = vrot.lane.b32.xlu0 %v1485, 24
      %v1982 = vpop.permute.xlu0 %1981
      %1983 = vrot.lane.b32.xlu0 %v1486, 24
      %v1984 = vpop.permute.xlu0 %1983
      %1985 = vrot.lane.b32.xlu0 %v1487, 24
      %v1986 = vpop.permute.xlu0 %1985
      %1987 = vrot.lane.b32.xlu0 %v1488, 24
      %v1988 = vpop.permute.xlu0 %1987
      %1989 = vrot.lane.b32.xlu0 %v1489, 24
      %v1990 = vpop.permute.xlu0 %1989
      %1991 = vrot.lane.b32.xlu0 %v1490, 24
      %v1992 = vpop.permute.xlu0 %1991
      %1993 = vrot.lane.b32.xlu0 %v1491, 24
      %v1994 = vpop.permute.xlu0 %1993
      %1995 = vrot.lane.b32.xlu0 %v1492, 24
      %v1996 = vpop.permute.xlu0 %1995
      %1997 = vrot.lane.b32.xlu0 %v1493, 24
      %v1998 = vpop.permute.xlu0 %1997
      %1999 = vrot.lane.b32.xlu0 %v1494, 24
      %v2000 = vpop.permute.xlu0 %1999
      %2001 = vrot.lane.b32.xlu0 %v1495, 24
      %v2002 = vpop.permute.xlu0 %2001
      %2003 = vrot.lane.b32.xlu0 %v1496, 24
      %v2004 = vpop.permute.xlu0 %2003
      %2005 = vrot.lane.b32.xlu0 %v1497, 24
      %v2006 = vpop.permute.xlu0 %2005
      %2007 = vrot.lane.b32.xlu0 %v1498, 24
      %v2008 = vpop.permute.xlu0 %2007
      %2009 = vrot.lane.b32.xlu0 %v1499, 24
      %v2010 = vpop.permute.xlu0 %2009
      %2011 = vrot.lane.b32.xlu0 %v1500, 24
      %v2012 = vpop.permute.xlu0 %2011
      %2013 = vrot.lane.b32.xlu0 %v1501, 24
      %v2014 = vpop.permute.xlu0 %2013
      %2079 = vrot.lane.b32.xlu0 %v1502, 32
      %v2080 = vpop.permute.xlu0 %2079
      %2081 = vrot.lane.b32.xlu0 %v1503, 32
      %v2082 = vpop.permute.xlu0 %2081
      %2083 = vrot.lane.b32.xlu0 %v1504, 32
      %v2084 = vpop.permute.xlu0 %2083
      %2085 = vrot.lane.b32.xlu0 %v1505, 32
      %v2086 = vpop.permute.xlu0 %2085
      %2087 = vrot.lane.b32.xlu0 %v1506, 32
      %v2088 = vpop.permute.xlu0 %2087
      %2089 = vrot.lane.b32.xlu0 %v1507, 32
      %v2090 = vpop.permute.xlu0 %2089
      %2091 = vrot.lane.b32.xlu0 %v1508, 32
      %v2092 = vpop.permute.xlu0 %2091
      %2093 = vrot.lane.b32.xlu0 %v1509, 32
      %v2094 = vpop.permute.xlu0 %2093
      %2095 = vrot.lane.b32.xlu0 %v1510, 32
      %v2096 = vpop.permute.xlu0 %2095
      %2097 = vrot.lane.b32.xlu0 %v1511, 32
      %v2098 = vpop.permute.xlu0 %2097
      %2099 = vrot.lane.b32.xlu0 %v1512, 32
      %v2100 = vpop.permute.xlu0 %2099
      %2101 = vrot.lane.b32.xlu0 %v1513, 32
      %v2102 = vpop.permute.xlu0 %2101
      %2103 = vrot.lane.b32.xlu0 %v1514, 32
      %v2104 = vpop.permute.xlu0 %2103
      %2105 = vrot.lane.b32.xlu0 %v1515, 32
      %v2106 = vpop.permute.xlu0 %2105
      %2107 = vrot.lane.b32.xlu0 %v1516, 32
      %v2108 = vpop.permute.xlu0 %2107
      %2109 = vrot.lane.b32.xlu0 %v1517, 32
      %v2110 = vpop.permute.xlu0 %2109
      %2111 = vrot.lane.b32.xlu0 %v1518, 32
      %v2112 = vpop.permute.xlu0 %2111
      %2113 = vrot.lane.b32.xlu0 %v1519, 32
      %v2114 = vpop.permute.xlu0 %2113
      %2115 = vrot.lane.b32.xlu0 %v1520, 32
      %v2116 = vpop.permute.xlu0 %2115
      %2117 = vrot.lane.b32.xlu0 %v1521, 32
      %v2118 = vpop.permute.xlu0 %2117
      %2119 = vrot.lane.b32.xlu0 %v1522, 32
      %v2120 = vpop.permute.xlu0 %2119
      %2121 = vrot.lane.b32.xlu0 %v1523, 32
      %v2122 = vpop.permute.xlu0 %2121
      %2123 = vrot.lane.b32.xlu0 %v1524, 32
      %v2124 = vpop.permute.xlu0 %2123
      %2125 = vrot.lane.b32.xlu0 %v1525, 32
      %v2126 = vpop.permute.xlu0 %2125
      %2127 = vrot.lane.b32.xlu0 %v1526, 32
      %v2128 = vpop.permute.xlu0 %2127
      %2129 = vrot.lane.b32.xlu0 %v1527, 32
      %v2130 = vpop.permute.xlu0 %2129
      %2131 = vrot.lane.b32.xlu0 %v1528, 32
      %v2132 = vpop.permute.xlu0 %2131
      %2133 = vrot.lane.b32.xlu0 %v1529, 32
      %v2134 = vpop.permute.xlu0 %2133
      %2135 = vrot.lane.b32.xlu0 %v1530, 32
      %v2136 = vpop.permute.xlu0 %2135
      %2137 = vrot.lane.b32.xlu0 %v1531, 32
      %v2138 = vpop.permute.xlu0 %2137
      %2139 = vrot.lane.b32.xlu0 %v1532, 32
      %v2140 = vpop.permute.xlu0 %2139
      %2141 = vrot.lane.b32.xlu0 %v1533, 32
      %v2142 = vpop.permute.xlu0 %2141
      %2207 = vrot.lane.b32.xlu0 %v1534, 40
      %v2208 = vpop.permute.xlu0 %2207
      %2209 = vrot.lane.b32.xlu0 %v1535, 40
      %v2210 = vpop.permute.xlu0 %2209
      %2211 = vrot.lane.b32.xlu0 %v1536, 40
      %v2212 = vpop.permute.xlu0 %2211
      %2213 = vrot.lane.b32.xlu0 %v1537, 40
      %v2214 = vpop.permute.xlu0 %2213
      %2215 = vrot.lane.b32.xlu0 %v1538, 40
      %v2216 = vpop.permute.xlu0 %2215
      %2217 = vrot.lane.b32.xlu0 %v1539, 40
      %v2218 = vpop.permute.xlu0 %2217
      %2219 = vrot.lane.b32.xlu0 %v1540, 40
      %v2220 = vpop.permute.xlu0 %2219
      %2221 = vrot.lane.b32.xlu0 %v1541, 40
      %v2222 = vpop.permute.xlu0 %2221
      %2223 = vrot.lane.b32.xlu0 %v1542, 40
      %v2224 = vpop.permute.xlu0 %2223
      %2225 = vrot.lane.b32.xlu0 %v1543, 40
      %v2226 = vpop.permute.xlu0 %2225
      %2227 = vrot.lane.b32.xlu0 %v1544, 40
      %v2228 = vpop.permute.xlu0 %2227
      %2229 = vrot.lane.b32.xlu0 %v1545, 40
      %v2230 = vpop.permute.xlu0 %2229
      %2231 = vrot.lane.b32.xlu0 %v1546, 40
      %v2232 = vpop.permute.xlu0 %2231
      %2233 = vrot.lane.b32.xlu0 %v1547, 40
      %v2234 = vpop.permute.xlu0 %2233
      %2235 = vrot.lane.b32.xlu0 %v1548, 40
      %v2236 = vpop.permute.xlu0 %2235
      %2237 = vrot.lane.b32.xlu0 %v1549, 40
      %v2238 = vpop.permute.xlu0 %2237
      %2239 = vrot.lane.b32.xlu0 %v1550, 40
      %v2240 = vpop.permute.xlu0 %2239
      %2241 = vrot.lane.b32.xlu0 %v1551, 40
      %v2242 = vpop.permute.xlu0 %2241
      %2243 = vrot.lane.b32.xlu0 %v1552, 40
      %v2244 = vpop.permute.xlu0 %2243
      %2245 = vrot.lane.b32.xlu0 %v1553, 40
      %v2246 = vpop.permute.xlu0 %2245
      %2247 = vrot.lane.b32.xlu0 %v1554, 40
      %v2248 = vpop.permute.xlu0 %2247
      %2249 = vrot.lane.b32.xlu0 %v1555, 40
      %v2250 = vpop.permute.xlu0 %2249
      %2251 = vrot.lane.b32.xlu0 %v1556, 40
      %v2252 = vpop.permute.xlu0 %2251
      %2253 = vrot.lane.b32.xlu0 %v1557, 40
      %v2254 = vpop.permute.xlu0 %2253
      %2255 = vrot.lane.b32.xlu0 %v1558, 40
      %v2256 = vpop.permute.xlu0 %2255
      %2257 = vrot.lane.b32.xlu0 %v1559, 40
      %v2258 = vpop.permute.xlu0 %2257
      %2259 = vrot.lane.b32.xlu0 %v1560, 40
      %v2260 = vpop.permute.xlu0 %2259
      %2261 = vrot.lane.b32.xlu0 %v1561, 40
      %v2262 = vpop.permute.xlu0 %2261
      %2263 = vrot.lane.b32.xlu0 %v1562, 40
      %v2264 = vpop.permute.xlu0 %2263
      %2265 = vrot.lane.b32.xlu0 %v1563, 40
      %v2266 = vpop.permute.xlu0 %2265
      %2267 = vrot.lane.b32.xlu0 %v1564, 40
      %v2268 = vpop.permute.xlu0 %2267
      %2269 = vrot.lane.b32.xlu0 %v1565, 40
      %v2270 = vpop.permute.xlu0 %2269
      %2335 = vrot.lane.b32.xlu0 %v1567, 48
      %v2336 = vpop.permute.xlu0 %2335
      %2337 = vrot.lane.b32.xlu0 %v1568, 48
      %v2338 = vpop.permute.xlu0 %2337
      %2339 = vrot.lane.b32.xlu0 %v1569, 48
      %v2340 = vpop.permute.xlu0 %2339
      %2341 = vrot.lane.b32.xlu0 %v1570, 48
      %v2342 = vpop.permute.xlu0 %2341
      %2343 = vrot.lane.b32.xlu0 %v1571, 48
      %v2344 = vpop.permute.xlu0 %2343
      %2345 = vrot.lane.b32.xlu0 %v1572, 48
      %v2346 = vpop.permute.xlu0 %2345
      %2347 = vrot.lane.b32.xlu0 %v1573, 48
      %v2348 = vpop.permute.xlu0 %2347
      %2349 = vrot.lane.b32.xlu0 %v1574, 48
      %v2350 = vpop.permute.xlu0 %2349
      %2351 = vrot.lane.b32.xlu0 %v1575, 48
      %v2352 = vpop.permute.xlu0 %2351
      %2353 = vrot.lane.b32.xlu0 %v1576, 48
      %v2354 = vpop.permute.xlu0 %2353
      %2355 = vrot.lane.b32.xlu0 %v1577, 48
      %v2356 = vpop.permute.xlu0 %2355
      %2357 = vrot.lane.b32.xlu0 %v1578, 48
      %v2358 = vpop.permute.xlu0 %2357
      %2359 = vrot.lane.b32.xlu0 %v1579, 48
      %v2360 = vpop.permute.xlu0 %2359
      %2361 = vrot.lane.b32.xlu0 %v1580, 48
      %v2362 = vpop.permute.xlu0 %2361
      %2363 = vrot.lane.b32.xlu0 %v1581, 48
      %v2364 = vpop.permute.xlu0 %2363
      %2365 = vrot.lane.b32.xlu0 %v1582, 48
      %v2366 = vpop.permute.xlu0 %2365
      %2367 = vrot.lane.b32.xlu0 %v1583, 48
      %v2368 = vpop.permute.xlu0 %2367
      %2369 = vrot.lane.b32.xlu0 %v1584, 48
      %v2370 = vpop.permute.xlu0 %2369
      %2371 = vrot.lane.b32.xlu0 %v1585, 48
      %v2372 = vpop.permute.xlu0 %2371
      %2373 = vrot.lane.b32.xlu0 %v1586, 48
      %v2374 = vpop.permute.xlu0 %2373
      %2375 = vrot.lane.b32.xlu0 %v1587, 48
      %v2376 = vpop.permute.xlu0 %2375
      %2377 = vrot.lane.b32.xlu0 %v1588, 48
      %v2378 = vpop.permute.xlu0 %2377
      %2379 = vrot.lane.b32.xlu0 %v1589, 48
      %v2380 = vpop.permute.xlu0 %2379
      %2381 = vrot.lane.b32.xlu0 %v1590, 48
      %v2382 = vpop.permute.xlu0 %2381
      %2383 = vrot.lane.b32.xlu0 %v1591, 48
      %v2384 = vpop.permute.xlu0 %2383
      %2385 = vrot.lane.b32.xlu0 %v1592, 48
      %v2386 = vpop.permute.xlu0 %2385
      %2387 = vrot.lane.b32.xlu0 %v1593, 48
      %v2388 = vpop.permute.xlu0 %2387
      %2389 = vrot.lane.b32.xlu0 %v1594, 48
      %v2390 = vpop.permute.xlu0 %2389
      %2391 = vrot.lane.b32.xlu0 %v1595, 48
      %v2392 = vpop.permute.xlu0 %2391
      %2393 = vrot.lane.b32.xlu0 %v1596, 48
      %v2394 = vpop.permute.xlu0 %2393
      %2395 = vrot.lane.b32.xlu0 %v1597, 48
      %v2396 = vpop.permute.xlu0 %2395
      %2397 = vrot.lane.b32.xlu0 %v1598, 48
      %v2398 = vpop.permute.xlu0 %2397
      %2463 = vrot.lane.b32.xlu0 %v1599, 56
      %v2464 = vpop.permute.xlu0 %2463
      %2465 = vrot.lane.b32.xlu0 %v1600, 56
      %v2466 = vpop.permute.xlu0 %2465
      %2467 = vrot.lane.b32.xlu0 %v1601, 56
      %v2468 = vpop.permute.xlu0 %2467
      %2469 = vrot.lane.b32.xlu0 %v1602, 56
      %v2470 = vpop.permute.xlu0 %2469
      %2471 = vrot.lane.b32.xlu0 %v1603, 56
      %v2472 = vpop.permute.xlu0 %2471
      %2473 = vrot.lane.b32.xlu0 %v1604, 56
      %v2474 = vpop.permute.xlu0 %2473
      %2475 = vrot.lane.b32.xlu0 %v1605, 56
      %v2476 = vpop.permute.xlu0 %2475
      %2477 = vrot.lane.b32.xlu0 %v1606, 56
      %v2478 = vpop.permute.xlu0 %2477
      %2479 = vrot.lane.b32.xlu0 %v1607, 56
      %v2480 = vpop.permute.xlu0 %2479
      %2481 = vrot.lane.b32.xlu0 %v1608, 56
      %v2482 = vpop.permute.xlu0 %2481
      %2483 = vrot.lane.b32.xlu0 %v1609, 56
      %v2484 = vpop.permute.xlu0 %2483
      %2485 = vrot.lane.b32.xlu0 %v1610, 56
      %v2486 = vpop.permute.xlu0 %2485
      %2487 = vrot.lane.b32.xlu0 %v1611, 56
      %v2488 = vpop.permute.xlu0 %2487
      %2489 = vrot.lane.b32.xlu0 %v1612, 56
      %v2490 = vpop.permute.xlu0 %2489
      %2491 = vrot.lane.b32.xlu0 %v1613, 56
      %v2492 = vpop.permute.xlu0 %2491
      %2493 = vrot.lane.b32.xlu0 %v1614, 56
      %v2494 = vpop.permute.xlu0 %2493
      %2495 = vrot.lane.b32.xlu0 %v1615, 56
      %v2496 = vpop.permute.xlu0 %2495
      %2497 = vrot.lane.b32.xlu0 %v1616, 56
      %v2498 = vpop.permute.xlu0 %2497
      %2499 = vrot.lane.b32.xlu0 %v1617, 56
      %v2500 = vpop.permute.xlu0 %2499
      %2501 = vrot.lane.b32.xlu0 %v1618, 56
      %v2502 = vpop.permute.xlu0 %2501
      %2503 = vrot.lane.b32.xlu0 %v1619, 56
      %v2504 = vpop.permute.xlu0 %2503
      %2505 = vrot.lane.b32.xlu0 %v1620, 56
      %v2506 = vpop.permute.xlu0 %2505
      %2507 = vrot.lane.b32.xlu0 %v1621, 56
      %v2508 = vpop.permute.xlu0 %2507
      %2509 = vrot.lane.b32.xlu0 %v1622, 56
      %v2510 = vpop.permute.xlu0 %2509
      %2511 = vrot.lane.b32.xlu0 %v1623, 56
      %v2512 = vpop.permute.xlu0 %2511
      %2513 = vrot.lane.b32.xlu0 %v1624, 56
      %v2514 = vpop.permute.xlu0 %2513
      %2515 = vrot.lane.b32.xlu0 %v1625, 56
      %v2516 = vpop.permute.xlu0 %2515
      %2517 = vrot.lane.b32.xlu0 %v1626, 56
      %v2518 = vpop.permute.xlu0 %2517
      %2519 = vrot.lane.b32.xlu0 %v1627, 56
      %v2520 = vpop.permute.xlu0 %2519
      %2521 = vrot.lane.b32.xlu0 %v1628, 56
      %v2522 = vpop.permute.xlu0 %2521
      %2523 = vrot.lane.b32.xlu0 %v1629, 56
      %v2524 = vpop.permute.xlu0 %2523
      %2525 = vrot.lane.b32.xlu0 %v1630, 56
      %v2526 = vpop.permute.xlu0 %2525
      %2591 = vrot.lane.b32.xlu0 %v1631, 64
      %v2592 = vpop.permute.xlu0 %2591
      %2593 = vrot.lane.b32.xlu0 %v1632, 64
      %v2594 = vpop.permute.xlu0 %2593
      %2595 = vrot.lane.b32.xlu0 %v1633, 64
      %v2596 = vpop.permute.xlu0 %2595
      %2597 = vrot.lane.b32.xlu0 %v1634, 64
      %v2598 = vpop.permute.xlu0 %2597
      %2599 = vrot.lane.b32.xlu0 %v1635, 64
      %v2600 = vpop.permute.xlu0 %2599
      %2601 = vrot.lane.b32.xlu0 %v1636, 64
      %v2602 = vpop.permute.xlu0 %2601
      %2603 = vrot.lane.b32.xlu0 %v1637, 64
      %v2604 = vpop.permute.xlu0 %2603
      %2605 = vrot.lane.b32.xlu0 %v1638, 64
      %v2606 = vpop.permute.xlu0 %2605
      %2607 = vrot.lane.b32.xlu0 %v1639, 64
      %v2608 = vpop.permute.xlu0 %2607
      %2609 = vrot.lane.b32.xlu0 %v1640, 64
      %v2610 = vpop.permute.xlu0 %2609
      %2611 = vrot.lane.b32.xlu0 %v1641, 64
      %v2612 = vpop.permute.xlu0 %2611
      %2613 = vrot.lane.b32.xlu0 %v1642, 64
      %v2614 = vpop.permute.xlu0 %2613
      %2615 = vrot.lane.b32.xlu0 %v1643, 64
      %v2616 = vpop.permute.xlu0 %2615
      %2617 = vrot.lane.b32.xlu0 %v1644, 64
      %v2618 = vpop.permute.xlu0 %2617
      %2619 = vrot.lane.b32.xlu0 %v1645, 64
      %v2620 = vpop.permute.xlu0 %2619
      %2621 = vrot.lane.b32.xlu0 %v1646, 64
      %v2622 = vpop.permute.xlu0 %2621
      %2623 = vrot.lane.b32.xlu0 %v1647, 64
      %v2624 = vpop.permute.xlu0 %2623
      %2625 = vrot.lane.b32.xlu0 %v1648, 64
      %v2626 = vpop.permute.xlu0 %2625
      %2627 = vrot.lane.b32.xlu0 %v1649, 64
      %v2628 = vpop.permute.xlu0 %2627
      %2629 = vrot.lane.b32.xlu0 %v1650, 64
      %v2630 = vpop.permute.xlu0 %2629
      %2631 = vrot.lane.b32.xlu0 %v1651, 64
      %v2632 = vpop.permute.xlu0 %2631
      %2633 = vrot.lane.b32.xlu0 %v1652, 64
      %v2634 = vpop.permute.xlu0 %2633
      %2635 = vrot.lane.b32.xlu0 %v1653, 64
      %v2636 = vpop.permute.xlu0 %2635
      %2637 = vrot.lane.b32.xlu0 %v1654, 64
      %v2638 = vpop.permute.xlu0 %2637
      %2639 = vrot.lane.b32.xlu0 %v1655, 64
      %v2640 = vpop.permute.xlu0 %2639
      %2641 = vrot.lane.b32.xlu0 %v1656, 64
      %v2642 = vpop.permute.xlu0 %2641
      %2643 = vrot.lane.b32.xlu0 %v1657, 64
      %v2644 = vpop.permute.xlu0 %2643
      %2645 = vrot.lane.b32.xlu0 %v1658, 64
      %v2646 = vpop.permute.xlu0 %2645
      %2647 = vrot.lane.b32.xlu0 %v1659, 64
      %v2648 = vpop.permute.xlu0 %2647
      %2649 = vrot.lane.b32.xlu0 %v1660, 64
      %v2650 = vpop.permute.xlu0 %2649
      %2651 = vrot.lane.b32.xlu0 %v1661, 64
      %v2652 = vpop.permute.xlu0 %2651
      %2653 = vrot.lane.b32.xlu0 %v1662, 64
      %v2654 = vpop.permute.xlu0 %2653
      %v2687 = vsel %vm1295, %v1374, %v1696
      %v2688 = vsel %vm1295, %v1375, %v1698
      %v2689 = vsel %vm1295, %v1376, %v1700
      %v2690 = vsel %vm1295, %v1377, %v1702
      %v2691 = vsel %vm1295, %v1378, %v1704
      %v2692 = vsel %vm1295, %v1379, %v1706
      %v2693 = vsel %vm1295, %v1380, %v1708
      %v2694 = vsel %vm1295, %v1381, %v1710
      %v2695 = vsel %vm1295, %v1382, %v1712
      %v2696 = vsel %vm1295, %v1383, %v1714
      %v2697 = vsel %vm1295, %v1384, %v1716
      %v2698 = vsel %vm1295, %v1385, %v1718
      %v2699 = vsel %vm1295, %v1386, %v1720
      %v2700 = vsel %vm1295, %v1387, %v1722
      %v2701 = vsel %vm1295, %v1388, %v1724
      %v2702 = vsel %vm1295, %v1389, %v1726
      %v2703 = vsel %vm1295, %v1390, %v1728
      %v2704 = vsel %vm1295, %v1391, %v1730
      %v2705 = vsel %vm1295, %v1392, %v1732
      %v2706 = vsel %vm1295, %v1393, %v1734
      %v2707 = vsel %vm1295, %v1394, %v1736
      %v2708 = vsel %vm1295, %v1395, %v1738
      %v2709 = vsel %vm1295, %v1396, %v1740
      %v2710 = vsel %vm1295, %v1397, %v1742
      %v2711 = vsel %vm1295, %v1398, %v1744
      %v2712 = vsel %vm1295, %v1399, %v1746
      %v2713 = vsel %vm1295, %v1400, %v1748
      %v2714 = vsel %vm1295, %v1401, %v1750
      %v2715 = vsel %vm1295, %v1402, %v1752
      %v2716 = vsel %vm1295, %v1403, %v1754
      %v2717 = vsel %vm1295, %v1404, %v1756
      %v2718 = vsel %vm1295, %v1405, %v1758
      %vm2719 = vcmask 130048
      %v2720 = vsel %vm2719, %v2687, %v1824
      %v2721 = vsel %vm2719, %v2688, %v1826
      %v2722 = vsel %vm2719, %v2689, %v1828
      %v2723 = vsel %vm2719, %v2690, %v1830
      %v2724 = vsel %vm2719, %v2691, %v1832
      %v2725 = vsel %vm2719, %v2692, %v1834
      %v2726 = vsel %vm2719, %v2693, %v1836
      %v2727 = vsel %vm2719, %v2694, %v1838
      %v2728 = vsel %vm2719, %v2695, %v1840
      %v2729 = vsel %vm2719, %v2696, %v1842
      %v2730 = vsel %vm2719, %v2697, %v1844
      %v2731 = vsel %vm2719, %v2698, %v1846
      %v2732 = vsel %vm2719, %v2699, %v1848
      %v2733 = vsel %vm2719, %v2700, %v1850
      %v2734 = vsel %vm2719, %v2701, %v1852
      %v2735 = vsel %vm2719, %v2702, %v1854
      %v2736 = vsel %vm2719, %v2703, %v1856
      %v2737 = vsel %vm2719, %v2704, %v1858
      %v2738 = vsel %vm2719, %v2705, %v1860
      %v2739 = vsel %vm2719, %v2706, %v1862
      %v2740 = vsel %vm2719, %v2707, %v1864
      %v2741 = vsel %vm2719, %v2708, %v1866
      %v2742 = vsel %vm2719, %v2709, %v1868
      %v2743 = vsel %vm2719, %v2710, %v1870
      %v2744 = vsel %vm2719, %v2711, %v1872
      %v2745 = vsel %vm2719, %v2712, %v1874
      %v2746 = vsel %vm2719, %v2713, %v1876
      %v2747 = vsel %vm2719, %v2714, %v1878
      %v2748 = vsel %vm2719, %v2715, %v1880
      %v2749 = vsel %vm2719, %v2716, %v1882
      %v2750 = vsel %vm2719, %v2717, %v1884
      %v2751 = vsel %vm2719, %v2718, %v1886
      %vm2752 = vcmask 195584
      %v2753 = vsel %vm2752, %v2720, %v1952
      %v2754 = vsel %vm2752, %v2721, %v1954
      %v2755 = vsel %vm2752, %v2722, %v1956
      %v2756 = vsel %vm2752, %v2723, %v1958
      %v2757 = vsel %vm2752, %v2724, %v1960
      %v2758 = vsel %vm2752, %v2725, %v1962
      %v2759 = vsel %vm2752, %v2726, %v1964
      %v2760 = vsel %vm2752, %v2727, %v1966
      %v2761 = vsel %vm2752, %v2728, %v1968
      %v2762 = vsel %vm2752, %v2729, %v1970
      %v2763 = vsel %vm2752, %v2730, %v1972
      %v2764 = vsel %vm2752, %v2731, %v1974
      %v2765 = vsel %vm2752, %v2732, %v1976
      %v2766 = vsel %vm2752, %v2733, %v1978
      %v2767 = vsel %vm2752, %v2734, %v1980
      %v2768 = vsel %vm2752, %v2735, %v1982
      %v2769 = vsel %vm2752, %v2736, %v1984
      %v2770 = vsel %vm2752, %v2737, %v1986
      %v2771 = vsel %vm2752, %v2738, %v1988
      %v2772 = vsel %vm2752, %v2739, %v1990
      %v2773 = vsel %vm2752, %v2740, %v1992
      %v2774 = vsel %vm2752, %v2741, %v1994
      %v2775 = vsel %vm2752, %v2742, %v1996
      %v2776 = vsel %vm2752, %v2743, %v1998
      %v2777 = vsel %vm2752, %v2744, %v2000
      %v2778 = vsel %vm2752, %v2745, %v2002
      %v2779 = vsel %vm2752, %v2746, %v2004
      %v2780 = vsel %vm2752, %v2747, %v2006
      %v2781 = vsel %vm2752, %v2748, %v2008
      %v2782 = vsel %vm2752, %v2749, %v2010
      %v2783 = vsel %vm2752, %v2750, %v2012
      %v2784 = vsel %vm2752, %v2751, %v2014
      %vm2785 = vcmask 261120
      %v2786 = vsel %vm2785, %v2753, %v2080
      %v2787 = vsel %vm2785, %v2754, %v2082
      %v2788 = vsel %vm2785, %v2755, %v2084
      %v2789 = vsel %vm2785, %v2756, %v2086
      %v2790 = vsel %vm2785, %v2757, %v2088
      %v2791 = vsel %vm2785, %v2758, %v2090
      %v2792 = vsel %vm2785, %v2759, %v2092
      %v2793 = vsel %vm2785, %v2760, %v2094
      %v2794 = vsel %vm2785, %v2761, %v2096
      %v2795 = vsel %vm2785, %v2762, %v2098
      %v2796 = vsel %vm2785, %v2763, %v2100
      %v2797 = vsel %vm2785, %v2764, %v2102
      %v2798 = vsel %vm2785, %v2765, %v2104
      %v2799 = vsel %vm2785, %v2766, %v2106
      %v2800 = vsel %vm2785, %v2767, %v2108
      %v2801 = vsel %vm2785, %v2768, %v2110
      %v2802 = vsel %vm2785, %v2769, %v2112
      %v2803 = vsel %vm2785, %v2770, %v2114
      %v2804 = vsel %vm2785, %v2771, %v2116
      %v2805 = vsel %vm2785, %v2772, %v2118
      %v2806 = vsel %vm2785, %v2773, %v2120
      %v2807 = vsel %vm2785, %v2774, %v2122
      %v2808 = vsel %vm2785, %v2775, %v2124
      %v2809 = vsel %vm2785, %v2776, %v2126
      %v2810 = vsel %vm2785, %v2777, %v2128
      %v2811 = vsel %vm2785, %v2778, %v2130
      %v2812 = vsel %vm2785, %v2779, %v2132
      %v2813 = vsel %vm2785, %v2780, %v2134
      %v2814 = vsel %vm2785, %v2781, %v2136
      %v2815 = vsel %vm2785, %v2782, %v2138
      %v2816 = vsel %vm2785, %v2783, %v2140
      %v2817 = vsel %vm2785, %v2784, %v2142
      %vm2818 = vcmask 326656
      %v2819 = vsel %vm2818, %v2786, %v2208
      %v2820 = vsel %vm2818, %v2787, %v2210
      %v2821 = vsel %vm2818, %v2788, %v2212
      %v2822 = vsel %vm2818, %v2789, %v2214
      %v2823 = vsel %vm2818, %v2790, %v2216
      %v2824 = vsel %vm2818, %v2791, %v2218
      %v2825 = vsel %vm2818, %v2792, %v2220
      %v2826 = vsel %vm2818, %v2793, %v2222
      %v2827 = vsel %vm2818, %v2794, %v2224
      %v2828 = vsel %vm2818, %v2795, %v2226
      %v2829 = vsel %vm2818, %v2796, %v2228
      %v2830 = vsel %vm2818, %v2797, %v2230
      %v2831 = vsel %vm2818, %v2798, %v2232
      %v2832 = vsel %vm2818, %v2799, %v2234
      %v2833 = vsel %vm2818, %v2800, %v2236
      %v2834 = vsel %vm2818, %v2801, %v2238
      %v2835 = vsel %vm2818, %v2802, %v2240
      %v2836 = vsel %vm2818, %v2803, %v2242
      %v2837 = vsel %vm2818, %v2804, %v2244
      %v2838 = vsel %vm2818, %v2805, %v2246
      %v2839 = vsel %vm2818, %v2806, %v2248
      %v2840 = vsel %vm2818, %v2807, %v2250
      %v2841 = vsel %vm2818, %v2808, %v2252
      %v2842 = vsel %vm2818, %v2809, %v2254
      %v2843 = vsel %vm2818, %v2810, %v2256
      %v2844 = vsel %vm2818, %v2811, %v2258
      %v2845 = vsel %vm2818, %v2812, %v2260
      %v2846 = vsel %vm2818, %v2813, %v2262
      %v2847 = vsel %vm2818, %v2814, %v2264
      %v2848 = vsel %vm2818, %v2815, %v2266
      %v2849 = vsel %vm2818, %v2816, %v2268
      %v2850 = vsel %vm2818, %v2817, %v2270
      %vm2851 = vcmask 392192
      %v2852 = vsel %vm2851, %v2819, %v2336
      %v2853 = vsel %vm2851, %v2820, %v2338
      %v2854 = vsel %vm2851, %v2821, %v2340
      %v2855 = vsel %vm2851, %v2822, %v2342
      %v2856 = vsel %vm2851, %v2823, %v2344
      %v2857 = vsel %vm2851, %v2824, %v2346
      %v2858 = vsel %vm2851, %v2825, %v2348
      %v2859 = vsel %vm2851, %v2826, %v2350
      %v2860 = vsel %vm2851, %v2827, %v2352
      %v2861 = vsel %vm2851, %v2828, %v2354
      %v2862 = vsel %vm2851, %v2829, %v2356
      %v2863 = vsel %vm2851, %v2830, %v2358
      %v2864 = vsel %vm2851, %v2831, %v2360
      %v2865 = vsel %vm2851, %v2832, %v2362
      %v2866 = vsel %vm2851, %v2833, %v2364
      %v2867 = vsel %vm2851, %v2834, %v2366
      %v2868 = vsel %vm2851, %v2835, %v2368
      %v2869 = vsel %vm2851, %v2836, %v2370
      %v2870 = vsel %vm2851, %v2837, %v2372
      %v2871 = vsel %vm2851, %v2838, %v2374
      %v2872 = vsel %vm2851, %v2839, %v2376
      %v2873 = vsel %vm2851, %v2840, %v2378
      %v2874 = vsel %vm2851, %v2841, %v2380
      %v2875 = vsel %vm2851, %v2842, %v2382
      %v2876 = vsel %vm2851, %v2843, %v2384
      %v2877 = vsel %vm2851, %v2844, %v2386
      %v2878 = vsel %vm2851, %v2845, %v2388
      %v2879 = vsel %vm2851, %v2846, %v2390
      %v2880 = vsel %vm2851, %v2847, %v2392
      %v2881 = vsel %vm2851, %v2848, %v2394
      %v2882 = vsel %vm2851, %v2849, %v2396
      %v2883 = vsel %vm2851, %v2850, %v2398
      %vm2884 = vcmask 457728
      %v2885 = vsel %vm2884, %v2852, %v2464
      %v2886 = vsel %vm2884, %v2853, %v2466
      %v2887 = vsel %vm2884, %v2854, %v2468
      %v2888 = vsel %vm2884, %v2855, %v2470
      %v2889 = vsel %vm2884, %v2856, %v2472
      %v2890 = vsel %vm2884, %v2857, %v2474
      %v2891 = vsel %vm2884, %v2858, %v2476
      %v2892 = vsel %vm2884, %v2859, %v2478
      %v2893 = vsel %vm2884, %v2860, %v2480
      %v2894 = vsel %vm2884, %v2861, %v2482
      %v2895 = vsel %vm2884, %v2862, %v2484
      %v2896 = vsel %vm2884, %v2863, %v2486
      %v2897 = vsel %vm2884, %v2864, %v2488
      %v2898 = vsel %vm2884, %v2865, %v2490
      %v2899 = vsel %vm2884, %v2866, %v2492
      %v2900 = vsel %vm2884, %v2867, %v2494
      %v2901 = vsel %vm2884, %v2868, %v2496
      %v2902 = vsel %vm2884, %v2869, %v2498
      %v2903 = vsel %vm2884, %v2870, %v2500
      %v2904 = vsel %vm2884, %v2871, %v2502
      %v2905 = vsel %vm2884, %v2872, %v2504
      %v2906 = vsel %vm2884, %v2873, %v2506
      %v2907 = vsel %vm2884, %v2874, %v2508
      %v2908 = vsel %vm2884, %v2875, %v2510
      %v2909 = vsel %vm2884, %v2876, %v2512
      %v2910 = vsel %vm2884, %v2877, %v2514
      %v2911 = vsel %vm2884, %v2878, %v2516
      %v2912 = vsel %vm2884, %v2879, %v2518
      %v2913 = vsel %vm2884, %v2880, %v2520
      %v2914 = vsel %vm2884, %v2881, %v2522
      %v2915 = vsel %vm2884, %v2882, %v2524
      %v2916 = vsel %vm2884, %v2883, %v2526
      %vm2917 = vcmask 523264
      %v2918 = vsel %vm2917, %v2885, %v2592
      %v2919 = vsel %vm2917, %v2886, %v2594
      %v2920 = vsel %vm2917, %v2887, %v2596
      %v2921 = vsel %vm2917, %v2888, %v2598
      %v2922 = vsel %vm2917, %v2889, %v2600
      %v2923 = vsel %vm2917, %v2890, %v2602
      %v2924 = vsel %vm2917, %v2891, %v2604
      %v2925 = vsel %vm2917, %v2892, %v2606
      %v2926 = vsel %vm2917, %v2893, %v2608
      %v2927 = vsel %vm2917, %v2894, %v2610
      %v2928 = vsel %vm2917, %v2895, %v2612
      %v2929 = vsel %vm2917, %v2896, %v2614
      %v2930 = vsel %vm2917, %v2897, %v2616
      %v2931 = vsel %vm2917, %v2898, %v2618
      %v2932 = vsel %vm2917, %v2899, %v2620
      %v2933 = vsel %vm2917, %v2900, %v2622
      %v2934 = vsel %vm2917, %v2901, %v2624
      %v2935 = vsel %vm2917, %v2902, %v2626
      %v2936 = vsel %vm2917, %v2903, %v2628
      %v2937 = vsel %vm2917, %v2904, %v2630
      %v2938 = vsel %vm2917, %v2905, %v2632
      %v2939 = vsel %vm2917, %v2906, %v2634
      %v2940 = vsel %vm2917, %v2907, %v2636
      %v2941 = vsel %vm2917, %v2908, %v2638
      %v2942 = vsel %vm2917, %v2909, %v2640
      %v2943 = vsel %vm2917, %v2910, %v2642
      %v2944 = vsel %vm2917, %v2911, %v2644
      %v2945 = vsel %vm2917, %v2912, %v2646
      %v2946 = vsel %vm2917, %v2913, %v2648
      %v2947 = vsel %vm2917, %v2914, %v2650
      %v2948 = vsel %vm2917, %v2915, %v2652
      %v2949 = vsel %vm2917, %v2916, %v2654
      %v2950 = vld [vmem:[%s3] sm:$0xff]
      %v2951 = vld [vmem:[%s3 + $0x8] sm:$0xff]
      %v2952 = vld [vmem:[%s3 + $0x10] sm:$0xff]
      %v2953 = vld [vmem:[%s3 + $0x18] sm:$0xff]
      %v2954 = vld [vmem:[%s3 + $0x20] sm:$0xff]
      %v2955 = vld [vmem:[%s3 + $0x28] sm:$0xff]
      %v2956 = vld [vmem:[%s3 + $0x30] sm:$0xff]
      %v2957 = vld [vmem:[%s3 + $0x38] sm:$0xff]
      %v2958 = vld [vmem:[%s3 + $0x40] sm:$0xff]
      %v2959 = vld [vmem:[%s4] sm:$0x1]
      %v2961 = vlaneseq
      %v2962 = vshrl.u32 %v2961, 7
      %v2963 = vsub.s32 0, %v2962
      %v2964 = vrot.slane %v2959, %v2963
      %vm2966 = vcmask 588800
      %v2968 = vsel %vm2966, %v2918, 0
      %v2971 = vsel %vm2966, %v2919, 0
      %v2974 = vsel %vm2966, %v2920, 0
      %v2977 = vsel %vm2966, %v2921, 0
      %v2980 = vsel %vm2966, %v2922, 0
      %v2983 = vsel %vm2966, %v2923, 0
      %v2986 = vsel %vm2966, %v2924, 0
      %v2989 = vsel %vm2966, %v2925, 0
      %v2992 = vsel %vm2966, %v2926, 0
      %v2995 = vsel %vm2966, %v2927, 0
      %v2998 = vsel %vm2966, %v2928, 0
      %v3001 = vsel %vm2966, %v2929, 0
      %v3004 = vsel %vm2966, %v2930, 0
      %v3007 = vsel %vm2966, %v2931, 0
      %v3010 = vsel %vm2966, %v2932, 0
      %v3013 = vsel %vm2966, %v2933, 0
      %v3016 = vsel %vm2966, %v2934, 0
      %v3019 = vsel %vm2966, %v2935, 0
      %v3022 = vsel %vm2966, %v2936, 0
      %v3025 = vsel %vm2966, %v2937, 0
      %v3028 = vsel %vm2966, %v2938, 0
      %v3031 = vsel %vm2966, %v2939, 0
      %v3034 = vsel %vm2966, %v2940, 0
      %v3037 = vsel %vm2966, %v2941, 0
      %v3040 = vsel %vm2966, %v2942, 0
      %v3043 = vsel %vm2966, %v2943, 0
      %v3046 = vsel %vm2966, %v2944, 0
      %v3049 = vsel %vm2966, %v2945, 0
      %v3052 = vsel %vm2966, %v2946, 0
      %v3055 = vsel %vm2966, %v2947, 0
      %v3058 = vsel %vm2966, %v2948, 0
      %v3061 = vsel %vm2966, %v2949, 0
      %3063 = vmatprep.subr.mxu0 0.0
      %3064 = vmatpush1.msra.mxu0 %v2950
      %3065 = vmatprep.subr.mxu0 0.0
      %3066 = vmatpush1.msra.mxu0 %v2951
      %3067 = vmatprep.subr.mxu0 0.0
      %3068 = vmatpush1.msra.mxu0 %v2952
      %3069 = vmatprep.subr.mxu0 0.0
      %3070 = vmatpush1.msra.mxu0 %v2953
      %3071 = vmatprep.subr.mxu0 0.0
      %3072 = vmatpush1.msra.mxu0 %v2954
      %3073 = vmatprep.subr.mxu0 0.0
      %3074 = vmatpush1.msra.mxu0 %v2955
      %3075 = vmatprep.subr.mxu0 0.0
      %3076 = vmatpush1.msra.mxu0 %v2956
      %3077 = vmatprep.subr.mxu0 0.0
      %3078 = vmatpush1.msra.mxu0 %v2957
      %3079 = vmatprep.subr.mxu0 0.0
      %3080 = vmatpush1.msra.mxu0 %v2958
      %3081 = vmatprep.subr.mxu0 0.0
      %3082 = vmatpush1.msra.mxu0 0.0
      %3083 = vmatprep.subr.mxu0 0.0
      %3084 = vmatpush1.msra.mxu0 0.0
      %3085 = vmatprep.subr.mxu0 0.0
      %3086 = vmatpush1.msra.mxu0 0.0
      %3087 = vmatprep.subr.mxu0 0.0
      %3088 = vmatpush1.msra.mxu0 0.0
      %3089 = vmatprep.subr.mxu0 0.0
      %3090 = vmatpush1.msra.mxu0 0.0
      %3091 = vmatprep.subr.mxu0 0.0
      %3092 = vmatpush1.msra.mxu0 0.0
      %3093 = vmatprep.subr.mxu0 0.0
      %3094 = vmatpush1.msra.mxu0 0.0
      %3095 = vmatprep.subr.mxu0 0.0
      %3096 = vmatpush1.msra.mxu0 0.0
      %3097 = vmatprep.subr.mxu0 0.0
      %3098 = vmatpush1.msra.mxu0 0.0
      %3099 = vmatprep.subr.mxu0 0.0
      %3100 = vmatpush1.msra.mxu0 0.0
      %3101 = vmatprep.subr.mxu0 0.0
      %3102 = vmatpush1.msra.mxu0 0.0
      %3103 = vmatprep.subr.mxu0 0.0
      %3104 = vmatpush1.msra.mxu0 0.0
      %3105 = vmatprep.subr.mxu0 0.0
      %3106 = vmatpush1.msra.mxu0 0.0
      %3107 = vmatprep.subr.mxu0 0.0
      %3108 = vmatpush1.msra.mxu0 0.0
      %3109 = vmatprep.subr.mxu0 0.0
      %3110 = vmatpush1.msra.mxu0 0.0
      %3111 = vmatprep.subr.mxu0 0.0
      %3112 = vmatpush1.msra.mxu0 0.0
      %3113 = vmatprep.subr.mxu0 0.0
      %3114 = vmatpush1.msra.mxu0 0.0
      %3115 = vmatprep.subr.mxu0 0.0
      %3116 = vmatpush1.msra.mxu0 0.0
      %3117 = vmatprep.subr.mxu0 0.0
      %3118 = vmatpush1.msra.mxu0 0.0
      %3119 = vmatprep.subr.mxu0 0.0
      %3120 = vmatpush1.msra.mxu0 0.0
      %3121 = vmatprep.subr.mxu0 0.0
      %3122 = vmatpush1.msra.mxu0 0.0
      %3123 = vmatprep.subr.mxu0 0.0
      %3124 = vmatpush1.msra.mxu0 0.0
      %3125 = vmatprep.subr.mxu0 0.0
      %3126 = vmatpush1.msra.mxu0 0.0
      %3127 = vmatprep.mubr.f32.mxu0 0.0
      %3128 = vmatmul.mubr.f32.gmra.mrb[0].mxu0 %v2968
      %v3129 = vpop.f32.mrb[0].mxu0
      %v3130 = vadd.f32 %v2964, %v3129
      %v3131 = vpop.f32.mrb[0].mxu0
      %3132 = vmatprep.mubr.f32.mxu0 0.0
      %3133 = vmatmul.mubr.f32.gmra.mrb[0].mxu0 %v2971
      %v3134 = vpop.f32.mrb[0].mxu0
      %v3135 = vadd.f32 %v2964, %v3134
      %v3136 = vpop.f32.mrb[0].mxu0
      %3137 = vmatprep.mubr.f32.mxu0 0.0
      %3138 = vmatmul.mubr.f32.gmra.mrb[0].mxu0 %v2974
      %v3139 = vpop.f32.mrb[0].mxu0
      %v3140 = vadd.f32 %v2964, %v3139
      %v3141 = vpop.f32.mrb[0].mxu0
      %3142 = vmatprep.mubr.f32.mxu0 0.0
      %3143 = vmatmul.mubr.f32.gmra.mrb[0].mxu0 %v2977
      %v3144 = vpop.f32.mrb[0].mxu0
      %v3145 = vadd.f32 %v2964, %v3144
      %v3146 = vpop.f32.mrb[0].mxu0
      %3147 = vmatprep.mubr.f32.mxu0 0.0
      %3148 = vmatmul.mubr.f32.gmra.mrb[0].mxu0 %v2980
      %v3149 = vpop.f32.mrb[0].mxu0
      %v3150 = vadd.f32 %v2964, %v3149
      %v3151 = vpop.f32.mrb[0].mxu0
      %3152 = vmatprep.mubr.f32.mxu0 0.0
      %3153 = vmatmul.mubr.f32.gmra.mrb[0].mxu0 %v2983
      %v3154 = vpop.f32.mrb[0].mxu0
      %v3155 = vadd.f32 %v2964, %v3154
      %v3156 = vpop.f32.mrb[0].mxu0
      %3157 = vmatprep.mubr.f32.mxu0 0.0
      %3158 = vmatmul.mubr.f32.gmra.mrb[0].mxu0 %v2986
      %v3159 = vpop.f32.mrb[0].mxu0
      %v3160 = vadd.f32 %v2964, %v3159
      %v3161 = vpop.f32.mrb[0].mxu0
      %3162 = vmatprep.mubr.f32.mxu0 0.0
      %3163 = vmatmul.mubr.f32.gmra.mrb[0].mxu0 %v2989
      %v3164 = vpop.f32.mrb[0].mxu0
      %v3165 = vadd.f32 %v2964, %v3164
      %v3166 = vpop.f32.mrb[0].mxu0
      %3167 = vmatprep.mubr.f32.mxu0 0.0
      %3168 = vmatmul.mubr.f32.gmra.mrb[0].mxu0 %v2992
      %v3169 = vpop.f32.mrb[0].mxu0
      %v3170 = vadd.f32 %v2964, %v3169
      %v3171 = vpop.f32.mrb[0].mxu0
      %3172 = vmatprep.mubr.f32.mxu0 0.0
      %3173 = vmatmul.mubr.f32.gmra.mrb[0].mxu0 %v2995
      %v3174 = vpop.f32.mrb[0].mxu0
      %v3175 = vadd.f32 %v2964, %v3174
      %v3176 = vpop.f32.mrb[0].mxu0
      %3177 = vmatprep.mubr.f32.mxu0 0.0
      %3178 = vmatmul.mubr.f32.gmra.mrb[0].mxu0 %v2998
      %v3179 = vpop.f32.mrb[0].mxu0
      %v3180 = vadd.f32 %v2964, %v3179
      %v3181 = vpop.f32.mrb[0].mxu0
      %3182 = vmatprep.mubr.f32.mxu0 0.0
      %3183 = vmatmul.mubr.f32.gmra.mrb[0].mxu0 %v3001
      %v3184 = vpop.f32.mrb[0].mxu0
      %v3185 = vadd.f32 %v2964, %v3184
      %v3186 = vpop.f32.mrb[0].mxu0
      %3187 = vmatprep.mubr.f32.mxu0 0.0
      %3188 = vmatmul.mubr.f32.gmra.mrb[0].mxu0 %v3004
      %v3189 = vpop.f32.mrb[0].mxu0
      %v3190 = vadd.f32 %v2964, %v3189
      %v3191 = vpop.f32.mrb[0].mxu0
      %3192 = vmatprep.mubr.f32.mxu0 0.0
      %3193 = vmatmul.mubr.f32.gmra.mrb[0].mxu0 %v3007
      %v3194 = vpop.f32.mrb[0].mxu0
      %v3195 = vadd.f32 %v2964, %v3194
      %v3196 = vpop.f32.mrb[0].mxu0
      %3197 = vmatprep.mubr.f32.mxu0 0.0
      %3198 = vmatmul.mubr.f32.gmra.mrb[0].mxu0 %v3010
      %v3199 = vpop.f32.mrb[0].mxu0
      %v3200 = vadd.f32 %v2964, %v3199
      %v3201 = vpop.f32.mrb[0].mxu0
      %3202 = vmatprep.mubr.f32.mxu0 0.0
      %3203 = vmatmul.mubr.f32.gmra.mrb[0].mxu0 %v3013
      %v3204 = vpop.f32.mrb[0].mxu0
      %v3205 = vadd.f32 %v2964, %v3204
      %v3206 = vpop.f32.mrb[0].mxu0
      %3207 = vmatprep.mubr.f32.mxu0 0.0
      %3208 = vmatmul.mubr.f32.gmra.mrb[0].mxu0 %v3016
      %v3209 = vpop.f32.mrb[0].mxu0
      %v3210 = vadd.f32 %v2964, %v3209
      %v3211 = vpop.f32.mrb[0].mxu0
      %3212 = vmatprep.mubr.f32.mxu0 0.0
      %3213 = vmatmul.mubr.f32.gmra.mrb[0].mxu0 %v3019
      %v3214 = vpop.f32.mrb[0].mxu0
      %v3215 = vadd.f32 %v2964, %v3214
      %v3216 = vpop.f32.mrb[0].mxu0
      %3217 = vmatprep.mubr.f32.mxu0 0.0
      %3218 = vmatmul.mubr.f32.gmra.mrb[0].mxu0 %v3022
      %v3219 = vpop.f32.mrb[0].mxu0
      %v3220 = vadd.f32 %v2964, %v3219
      %v3221 = vpop.f32.mrb[0].mxu0
      %3222 = vmatprep.mubr.f32.mxu0 0.0
      %3223 = vmatmul.mubr.f32.gmra.mrb[0].mxu0 %v3025
      %v3224 = vpop.f32.mrb[0].mxu0
      %v3225 = vadd.f32 %v2964, %v3224
      %v3226 = vpop.f32.mrb[0].mxu0
      %3227 = vmatprep.mubr.f32.mxu0 0.0
      %3228 = vmatmul.mubr.f32.gmra.mrb[0].mxu0 %v3028
      %v3229 = vpop.f32.mrb[0].mxu0
      %v3230 = vadd.f32 %v2964, %v3229
      %v3231 = vpop.f32.mrb[0].mxu0
      %3232 = vmatprep.mubr.f32.mxu0 0.0
      %3233 = vmatmul.mubr.f32.gmra.mrb[0].mxu0 %v3031
      %v3234 = vpop.f32.mrb[0].mxu0
      %v3235 = vadd.f32 %v2964, %v3234
      %v3236 = vpop.f32.mrb[0].mxu0
      %3237 = vmatprep.mubr.f32.mxu0 0.0
      %3238 = vmatmul.mubr.f32.gmra.mrb[0].mxu0 %v3034
      %v3239 = vpop.f32.mrb[0].mxu0
      %v3240 = vadd.f32 %v2964, %v3239
      %v3241 = vpop.f32.mrb[0].mxu0
      %3242 = vmatprep.mubr.f32.mxu0 0.0
      %3243 = vmatmul.mubr.f32.gmra.mrb[0].mxu0 %v3037
      %v3244 = vpop.f32.mrb[0].mxu0
      %v3245 = vadd.f32 %v2964, %v3244
      %v3246 = vpop.f32.mrb[0].mxu0
      %3247 = vmatprep.mubr.f32.mxu0 0.0
      %3248 = vmatmul.mubr.f32.gmra.mrb[0].mxu0 %v3040
      %v3249 = vpop.f32.mrb[0].mxu0
      %v3250 = vadd.f32 %v2964, %v3249
      %v3251 = vpop.f32.mrb[0].mxu0
      %3252 = vmatprep.mubr.f32.mxu0 0.0
      %3253 = vmatmul.mubr.f32.gmra.mrb[0].mxu0 %v3043
      %v3254 = vpop.f32.mrb[0].mxu0
      %v3255 = vadd.f32 %v2964, %v3254
      %v3256 = vpop.f32.mrb[0].mxu0
      %3257 = vmatprep.mubr.f32.mxu0 0.0
      %3258 = vmatmul.mubr.f32.gmra.mrb[0].mxu0 %v3046
      %v3259 = vpop.f32.mrb[0].mxu0
      %v3260 = vadd.f32 %v2964, %v3259
      %v3261 = vpop.f32.mrb[0].mxu0
      %3262 = vmatprep.mubr.f32.mxu0 0.0
      %3263 = vmatmul.mubr.f32.gmra.mrb[0].mxu0 %v3049
      %v3264 = vpop.f32.mrb[0].mxu0
      %v3265 = vadd.f32 %v2964, %v3264
      %v3266 = vpop.f32.mrb[0].mxu0
      %3267 = vmatprep.mubr.f32.mxu0 0.0
      %3268 = vmatmul.mubr.f32.gmra.mrb[0].mxu0 %v3052
      %v3269 = vpop.f32.mrb[0].mxu0
      %v3270 = vadd.f32 %v2964, %v3269
      %v3271 = vpop.f32.mrb[0].mxu0
      %3272 = vmatprep.mubr.f32.mxu0 0.0
      %3273 = vmatmul.mubr.f32.gmra.mrb[0].mxu0 %v3055
      %v3274 = vpop.f32.mrb[0].mxu0
      %v3275 = vadd.f32 %v2964, %v3274
      %v3276 = vpop.f32.mrb[0].mxu0
      %3277 = vmatprep.mubr.f32.mxu0 0.0
      %3278 = vmatmul.mubr.f32.gmra.mrb[0].mxu0 %v3058
      %v3279 = vpop.f32.mrb[0].mxu0
      %v3280 = vadd.f32 %v2964, %v3279
      %v3281 = vpop.f32.mrb[0].mxu0
      %3282 = vmatprep.mubr.f32.mxu0 0.0
      %3283 = vmatmul.mubr.f32.gmra.mrb[0].mxu0 %v3061
      %v3284 = vpop.f32.mrb[0].mxu0
      %v3285 = vadd.f32 %v2964, %v3284
      %v3286 = vpop.f32.mrb[0].mxu0
      %3287 = vdwg.mxu0
      %v3288 = vadd.f32 %v3130, %v225
      %v3289 = vadd.f32 %v3135, %v226
      %v3290 = vadd.f32 %v3140, %v227
      %v3291 = vadd.f32 %v3145, %v228
      %v3292 = vadd.f32 %v3150, %v229
      %v3293 = vadd.f32 %v3155, %v230
      %v3294 = vadd.f32 %v3160, %v231
      %v3295 = vadd.f32 %v3165, %v232
      %v3296 = vadd.f32 %v3170, %v233
      %v3297 = vadd.f32 %v3175, %v234
      %v3298 = vadd.f32 %v3180, %v235
      %v3299 = vadd.f32 %v3185, %v236
      %v3300 = vadd.f32 %v3190, %v237
      %v3301 = vadd.f32 %v3195, %v238
      %v3302 = vadd.f32 %v3200, %v239
      %v3303 = vadd.f32 %v3205, %v240
      %v3304 = vadd.f32 %v3210, %v241
      %v3305 = vadd.f32 %v3215, %v242
      %v3306 = vadd.f32 %v3220, %v243
      %v3307 = vadd.f32 %v3225, %v244
      %v3308 = vadd.f32 %v3230, %v245
      %v3309 = vadd.f32 %v3235, %v246
      %v3310 = vadd.f32 %v3240, %v247
      %v3311 = vadd.f32 %v3245, %v248
      %v3312 = vadd.f32 %v3250, %v249
      %v3313 = vadd.f32 %v3255, %v250
      %v3314 = vadd.f32 %v3260, %v251
      %v3315 = vadd.f32 %v3265, %v252
      %v3316 = vadd.f32 %v3270, %v253
      %v3317 = vadd.f32 %v3275, %v254
      %v3318 = vadd.f32 %v3280, %v255
      %v3319 = vadd.f32 %v3285, %v256
      %3320 = vst.msk [vmem:[%s224] sm:$0xff] %vm265, %v3288
      %3321 = vst.msk [vmem:[%s224 + $0x8] sm:$0xff] %vm265, %v3289
      %3322 = vst.msk [vmem:[%s224 + $0x10] sm:$0xff] %vm265, %v3290
      %3323 = vst.msk [vmem:[%s224 + $0x18] sm:$0xff] %vm265, %v3291
      %3324 = vst.msk [vmem:[%s224 + $0x20] sm:$0xff] %vm265, %v3292
      %3325 = vst.msk [vmem:[%s224 + $0x28] sm:$0xff] %vm265, %v3293
      %3326 = vst.msk [vmem:[%s224 + $0x30] sm:$0xff] %vm265, %v3294
      %3327 = vst.msk [vmem:[%s224 + $0x38] sm:$0xff] %vm265, %v3295
      %3328 = vst.msk [vmem:[%s224 + $0x40] sm:$0xff] %vm265, %v3296
      %3329 = vst.msk [vmem:[%s224 + $0x48] sm:$0xff] %vm265, %v3297
      %3330 = vst.msk [vmem:[%s224 + $0x50] sm:$0xff] %vm265, %v3298
      %3331 = vst.msk [vmem:[%s224 + $0x58] sm:$0xff] %vm265, %v3299
      %3332 = vst.msk [vmem:[%s224 + $0x60] sm:$0xff] %vm265, %v3300
      %3333 = vst.msk [vmem:[%s224 + $0x68] sm:$0xff] %vm265, %v3301
      %3334 = vst.msk [vmem:[%s224 + $0x70] sm:$0xff] %vm265, %v3302
      %3335 = vst.msk [vmem:[%s224 + $0x78] sm:$0xff] %vm265, %v3303
      %3336 = vst.msk [vmem:[%s224 + $0x80] sm:$0xff] %vm265, %v3304
      %3337 = vst.msk [vmem:[%s224 + $0x88] sm:$0xff] %vm265, %v3305
      %3338 = vst.msk [vmem:[%s224 + $0x90] sm:$0xff] %vm265, %v3306
      %3339 = vst.msk [vmem:[%s224 + $0x98] sm:$0xff] %vm265, %v3307
      %3340 = vst.msk [vmem:[%s224 + $0xa0] sm:$0xff] %vm265, %v3308
      %3341 = vst.msk [vmem:[%s224 + $0xa8] sm:$0xff] %vm265, %v3309
      %3342 = vst.msk [vmem:[%s224 + $0xb0] sm:$0xff] %vm265, %v3310
      %3343 = vst.msk [vmem:[%s224 + $0xb8] sm:$0xff] %vm265, %v3311
      %3344 = vst.msk [vmem:[%s224 + $0xc0] sm:$0xff] %vm265, %v3312
      %3345 = vst.msk [vmem:[%s224 + $0xc8] sm:$0xff] %vm265, %v3313
      %3346 = vst.msk [vmem:[%s224 + $0xd0] sm:$0xff] %vm265, %v3314
      %3347 = vst.msk [vmem:[%s224 + $0xd8] sm:$0xff] %vm265, %v3315
      %3348 = vst.msk [vmem:[%s224 + $0xe0] sm:$0xff] %vm265, %v3316
      %3349 = vst.msk [vmem:[%s224 + $0xe8] sm:$0xff] %vm265, %v3317
      %3350 = vst.msk [vmem:[%s224 + $0xf0] sm:$0xff] %vm265, %v3318
      %3351 = vst.msk [vmem:[%s224 + $0xf8] sm:$0xff] %vm265, %v3319
      %p3352 = scmp.lt.s32.totalorder %s16, 1
      %s3353 = scalar_select %p3352, %s16, 1
      %s3354 = smul.addr %s3353, 32
      %s3355 = smul.addr %s3354, 8
      %s3356 = scalar_lea.vmem %s5, %s3355
      // Predicated region
      $region41: #{tpu_custom_call.1} parent=39 // pred_check
        %p3357 = pneg %p144
      $region42: #{tpu_custom_call.1} parent=39 // pred_check_branch
        %3359 = sbr.rel (%p3357) target = $region44
      $region43: #{tpu_custom_call.1} parent=39 // pred_region
        _
      $region44: #{tpu_custom_call.1} parent=39 // pred_fallthru
        _
    $region40: #{tpu_custom_call.1} parent=5 // pred_fallthru
      _
    %p3360 = scmp.le.s32.totalorder 2, %s11
    // Predicated region
    $region45: #{tpu_custom_call.1} parent=5 // pred_check
      %p3361 = pneg %p3360
    $region46: #{tpu_custom_call.1} parent=5 // pred_check_branch
      %3363 = sbr.rel (%p3361) target = $region48
    $region47: #{tpu_custom_call.1} parent=5 // pred_region
      %s3364 = ssub.s32 %s11, 2
      // Predicated region
      $region49: #{tpu_custom_call.1} parent=47 // pred_check
        %p3365 = pneg %p150
      $region50: #{tpu_custom_call.1} parent=47 // pred_check_branch
        %3367 = sbr.rel (%p3365) target = $region52
      $region51: #{tpu_custom_call.1} parent=47 // pred_region
        %p3368 = scmp.lt.s32.totalorder %s17, 1
        %s3369 = scalar_select %p3368, %s17, 1
        %s3370 = smul.addr %s3369, 32
        %s3371 = smul.addr %s3370, 8
        %s3372 = scalar_lea.vmem %s5, %s3371
      $region52: #{tpu_custom_call.1} parent=47 // pred_fallthru
        _
    $region48: #{tpu_custom_call.1} parent=5 // pred_fallthru
      _
  $region6: #{tpu_custom_call.1} parent=0 // loop_footer
    %s15 = sadd.s32 1, %s11
  $region7: #{tpu_custom_call.1} parent=0 // loop_footer_branch
    %10 = sbr.rel target = $region3
  $region8: #{tpu_custom_call.1} parent=0 // loop_exit
    _

</llo_original>
